<compile_context>
chip_gen: v7x
topology: tpu7x:2x2x1
jax: 0.10.0
libtpu: 0.0.40
codegen_flags: <defaults>
</compile_context>

<pallas_src>
import functools
import math

import numpy as np
import jax
import jax.numpy as jnp
from jax import lax
from jax.experimental import pallas as pl
from jax.experimental.pallas import tpu as pltpu


def _silu(x):
    return x * jax.nn.sigmoid(x)


def mamba_block_kernel(
    # inputs
    x_ref,            # (b_tile, l, d_model)
    w_in_x_t_ref,     # (d_model, d_inner)
    w_in_res_t_ref,   # (d_model, d_inner)
    conv_w_t_ref,     # (d_conv, d_inner)
    conv_b_ref,       # (1, d_inner)
    w_delta_t_ref,    # (d_inner, dt_rank)
    w_b_t_ref,        # (d_inner, d_state)
    w_c_t_ref,        # (d_inner, d_state)
    w_dt_t_ref,       # (dt_rank, d_inner)
    dt_b_ref,         # (1, d_inner)
    a_t_ref,          # (d_state, d_inner)   A = -exp(A_log), transposed
    d_param_ref,      # (1, d_inner)
    w_out_t_ref,      # (d_inner, d_model)
    # output
    out_ref,          # (b_tile, l, d_model)
    # scratch (layout depends on `precompute`, unpacked below)
    *scratch,
    b_tile, l, d_model, d_inner, d_state, dt_rank, d_conv,
    skip, remove_conv, skip_strength, precompute,
):
    bt = b_tile
    m = bt * l

    if precompute:
        dA_scr, dBu_scr, c_scr, y_scr = scratch
    else:
        delta_scr, du_scr, b_scr, c_scr, y_scr = scratch

    # ---- in_proj: two lane-aligned matmuls (no misaligned xz split) ----
    x2d = x_ref[...].reshape(m, d_model)
    x_in2d = jnp.dot(x2d, w_in_x_t_ref[...], preferred_element_type=jnp.float32)
    if skip == 'Gating':
        res2d = jnp.dot(x2d, w_in_res_t_ref[...], preferred_element_type=jnp.float32)

    # ---- depthwise causal conv1d: taps built in registers, lane-aligned weights ----
    if not remove_conv:
        x3 = x_in2d.reshape(bt, l, d_inner)
        conv3 = jnp.zeros((bt, l, d_inner), jnp.float32)
        for k in range(d_conv):                       # static, d_conv is small
            shift = d_conv - 1 - k
            w_k = conv_w_t_ref[k][None, None, :]      # (1, 1, d_inner) lane-aligned row
            if shift == 0:
                tap = x3
            else:
                tap = jnp.concatenate(
                    [jnp.zeros((bt, shift, d_inner), jnp.float32),
                     x3[:, :l - shift, :]],
                    axis=1)
            conv3 = conv3 + tap * w_k
        u2d = _silu(conv3.reshape(m, d_inner) + conv_b_ref[...])
    else:
        u2d = x_in2d

    # ---- x_proj as three aligned matmuls, then dt_proj + softplus ----
    dr2d = jnp.dot(u2d, w_delta_t_ref[...], preferred_element_type=jnp.float32)
    b2d = jnp.dot(u2d, w_b_t_ref[...], preferred_element_type=jnp.float32)
    c2d = jnp.dot(u2d, w_c_t_ref[...], preferred_element_type=jnp.float32)
    delta2d = jax.nn.softplus(
        jnp.dot(dr2d, w_dt_t_ref[...], preferred_element_type=jnp.float32)
        + dt_b_ref[...])
    du2d = delta2d * u2d

    a_t = a_t_ref[...]          # (d_state, d_inner), loaded once
    c_scr[...] = c2d            # (m, d_state)

    # ---- selective scan: state (d_state, d_inner) keeps d_inner on the lane axis ----
    if precompute:
        # Hoist the EUP exp and the outer products out of the serial recurrence.
        dA_scr[...] = jnp.exp(delta2d.reshape(m, 1, d_inner) * a_t[None, :, :])
        dBu_scr[...] = b2d.reshape(m, d_state, 1) * du2d.reshape(m, 1, d_inner)

        def make_body(base):
            def body(i, st):
                r = base + i
                st = dA_scr[r] * st + dBu_scr[r]           # pure VPU FMA
                y_scr[r, :] = jnp.sum(c_scr[r][:, None] * st, axis=0)
                return st
            return body
    else:
        # Fallback path for large l*d_state*d_inner: stash per-step operands and
        # recompute exp(delta*A) inside the loop (EUP slot, overlapped by unroll).
        delta_scr[...] = delta2d
        du_scr[...] = du2d
        b_scr[...] = b2d

        def make_body(base):
            def body(i, st):
                r = base + i
                d_row = delta_scr[r][None, :]               # (1, d_inner)
                du_row = du_scr[r][None, :]                 # (1, d_inner)
                b_col = b_scr[r][:, None]                   # (d_state, 1)
                dA = jnp.exp(d_row * a_t)                   # (d_state, d_inner)
                st = dA * st + b_col * du_row
                y_scr[r, :] = jnp.sum(c_scr[r][:, None] * st, axis=0)
                return st
            return body

    for jb in range(bt):                                    # static loop over batch tile
        lax.fori_loop(0, l, make_body(jb * l),
                      jnp.zeros((d_state, d_inner), jnp.float32),
                      unroll=min(8, l))

    # ---- D skip, gating / additive skip, out_proj ----
    y2d = y_scr[...] + u2d * d_param_ref[...]
    if skip == 'Gating':
        y2d = y2d * _silu(res2d)
    elif skip == 'Additive':
        y2d = y2d + skip_strength * u2d
    elif skip == 'No Skip':
        pass
    else:
        raise ValueError('The chosen value of skip is not supported')

    out2d = jnp.dot(y2d, w_out_t_ref[...], preferred_element_type=jnp.float32)
    out_ref[...] = out2d.reshape(bt, l, d_model)


def mamba_block_forward(x, params, *, skip, remove_conv, skip_strength,
                        d_inner, d_state, dt_rank, d_conv, b_tile=1,
                        precompute_budget_bytes=4 * 1024 * 1024):
    b, l, d_model = x.shape
    assert b % b_tile == 0, "b must be divisible by b_tile"
    m = b_tile * l

    # Precompute exp(delta*A) / delta*B*u for the whole block only if the two
    # (m, d_state, d_inner) f32 tensors fit the scratch budget.
    precompute = (2 * m * d_state * d_inner * 4) <= precompute_budget_bytes

    weight_names = ['w_in_x_t', 'w_in_res_t', 'conv_w_t', 'conv_b', 'w_delta_t',
                    'w_b_t', 'w_c_t', 'w_dt_t', 'dt_b', 'a_t', 'd_param', 'w_out_t']
    weights = tuple(params[n] for n in weight_names)

    kern = functools.partial(
        mamba_block_kernel,
        b_tile=b_tile, l=l, d_model=d_model, d_inner=d_inner, d_state=d_state,
        dt_rank=dt_rank, d_conv=d_conv,
        skip=skip, remove_conv=remove_conv, skip_strength=skip_strength,
        precompute=precompute,
    )

    if precompute:
        scratch_shapes = [
            pltpu.VMEM((m, d_state, d_inner), jnp.float32),  # exp(delta*A)
            pltpu.VMEM((m, d_state, d_inner), jnp.float32),  # delta*B*u
            pltpu.VMEM((m, d_state), jnp.float32),           # C
            pltpu.VMEM((m, d_inner), jnp.float32),           # y (scan output)
        ]
    else:
        scratch_shapes = [
            pltpu.VMEM((m, d_inner), jnp.float32),           # delta
            pltpu.VMEM((m, d_inner), jnp.float32),           # delta * u
            pltpu.VMEM((m, d_state), jnp.float32),           # B
            pltpu.VMEM((m, d_state), jnp.float32),           # C
            pltpu.VMEM((m, d_inner), jnp.float32),           # y (scan output)
        ]

    return pl.pallas_call(
        kern,
        out_shape=jax.ShapeDtypeStruct((b, l, d_model), jnp.float32),
        grid_spec=pltpu.PrefetchScalarGridSpec(
            num_scalar_prefetch=0,
            grid=(b // b_tile,),
            in_specs=[pl.BlockSpec((b_tile, l, d_model), lambda i: (i, 0, 0))]
                     + [pl.BlockSpec(w.shape, lambda i: (0, 0)) for w in weights],
            out_specs=pl.BlockSpec((b_tile, l, d_model), lambda i: (i, 0, 0)),
            scratch_shapes=scratch_shapes,
        ),
        # batch elements are independent -> shard across TensorCores on v7x
        compiler_params=pltpu.CompilerParams(dimension_semantics=("parallel",)),
    )(x, *weights)


def mamba_block_reference(x, p, *, skip, remove_conv, skip_strength,
                          d_inner, d_state, dt_rank, d_conv):
    """Pure-JAX reference matching the PyTorch MambaBlock.forward semantics."""
    b, l, d = x.shape
    x_in = x @ p['w_in_x_t']
    res = x @ p['w_in_res_t']
    if not remove_conv:
        conv = jnp.zeros((b, l, d_inner), jnp.float32)
        for k in range(d_conv):
            shift = d_conv - 1 - k
            if shift == 0:
                tap = x_in
            else:
                tap = jnp.pad(x_in[:, :l - shift, :], ((0, 0), (shift, 0), (0, 0)))
            conv = conv + tap * p['conv_w_t'][k][None, None, :]
        u = jax.nn.silu(conv + p['conv_b'][0][None, None, :])
    else:
        u = x_in
    delta = jax.nn.softplus((u @ p['w_delta_t']) @ p['w_dt_t'] + p['dt_b'][0])
    B = u @ p['w_b_t']
    C = u @ p['w_c_t']
    A = p['a_t'].T                                              # (d_inner, d_state)
    deltaA = jnp.exp(delta[..., None] * A[None, None])          # (b,l,d_in,n)
    dBu = delta[..., None] * u[..., None] * B[:, :, None, :]    # (b,l,d_in,n)
    state = jnp.zeros((b, d_inner, d_state), jnp.float32)
    ys = []
    for i in range(l):
        state = deltaA[:, i] * state + dBu[:, i]
        ys.append(jnp.einsum('bdn,bn->bd', state, C[:, i]))
    y = jnp.stack(ys, axis=1) + u * p['d_param'][0][None, None, :]
    if skip == 'Gating':
        y = y * jax.nn.silu(res)
    elif skip == 'Additive':
        y = y + skip_strength * u
    return y @ p['w_out_t']


def init_params(key, d_model, d_inner, d_state, dt_rank, d_conv):
    ks = jax.random.split(key, 7)
    s = 0.1
    w_in = s * jax.random.normal(ks[0], (2 * d_inner, d_model), jnp.float32)
    conv_w = s * jax.random.normal(ks[1], (d_inner, d_conv), jnp.float32)
    conv_b = s * jax.random.normal(ks[2], (1, d_inner), jnp.float32)
    w_xp = s * jax.random.normal(ks[3], (dt_rank + 2 * d_state, d_inner), jnp.float32)
    w_dt = s * jax.random.normal(ks[4], (d_inner, dt_rank), jnp.float32)
    dt_b = s * jax.random.normal(ks[5], (1, d_inner), jnp.float32)
    w_out = s * jax.random.normal(ks[6], (d_model, d_inner), jnp.float32)
    a_log = jnp.log(jnp.broadcast_to(jnp.arange(1, d_state + 1, dtype=jnp.float32),
                                     (d_inner, d_state)))
    return {
        # in_proj split into x- and res-halves (lane-aligned kernel splits)
        'w_in_x_t': w_in[:d_inner].T,                    # (d_model, d_inner)
        'w_in_res_t': w_in[d_inner:].T,                  # (d_model, d_inner)
        'conv_w_t': conv_w.T,                            # (d_conv, d_inner)
        'conv_b': conv_b,                                # (1, d_inner)
        # x_proj split into delta / B / C slabs
        'w_delta_t': w_xp[:dt_rank].T,                   # (d_inner, dt_rank)
        'w_b_t': w_xp[dt_rank:dt_rank + d_state].T,      # (d_inner, d_state)
        'w_c_t': w_xp[dt_rank + d_state:].T,             # (d_inner, d_state)
        'w_dt_t': w_dt.T,                                # (dt_rank, d_inner)
        'dt_b': dt_b,                                    # (1, d_inner)
        'a_t': (-jnp.exp(a_log)).T,                      # (d_state, d_inner), A precomputed
        'd_param': jnp.ones((1, d_inner), jnp.float32),  # (1, d_inner)
        'w_out_t': w_out.T,                              # (d_inner, d_model)
    }


if __name__ == "__main__":
    # ModelArgs(d_model=8, ...): d_inner = 16, dt_rank = ceil(8/16) = 1,
    # d_state = 16, d_conv = 4.  ResidualBlockNoSkipNoNorm just forwards MambaBlock.
    b, seq_l, d_model = 2, 8, 8
    expand, d_state, d_conv = 2, 16, 4
    d_inner = expand * d_model
    dt_rank = math.ceil(d_model / 16)

    key = jax.random.PRNGKey(0)
    k_x, k_p = jax.random.split(key)
    x = jax.random.normal(k_x, (b, seq_l, d_model), jnp.float32)
    params = init_params(k_p, d_model, d_inner, d_state, dt_rank, d_conv)

    configs = [
        dict(skip='Gating', remove_conv=False, skip_strength=1.0, b_tile=1),
        dict(skip='Gating', remove_conv=False, skip_strength=1.0, b_tile=2),
        dict(skip='Additive', remove_conv=True, skip_strength=0.5, b_tile=2),
        # force the fallback (per-step exp) path so both code paths are exercised
        dict(skip='No Skip', remove_conv=False, skip_strength=1.0, b_tile=1,
             precompute_budget_bytes=0),
    ]
    for cfg in configs:
        bt = cfg.pop('b_tile')
        budget = cfg.pop('precompute_budget_bytes', 4 * 1024 * 1024)
        out = mamba_block_forward(
            x, params, d_inner=d_inner, d_state=d_state, dt_rank=dt_rank,
            d_conv=d_conv, b_tile=bt, precompute_budget_bytes=budget, **cfg)
        out = jax.block_until_ready(out)
        ref = mamba_block_reference(
            x, params, d_inner=d_inner, d_state=d_state, dt_rank=dt_rank,
            d_conv=d_conv, **cfg)
        np.testing.assert_allclose(np.asarray(out), np.asarray(ref),
                                   rtol=2e-4, atol=2e-5)

    print("KERNEL_OK")
</pallas_src>

<mosaic_0001>
module attributes {stable_mosaic.version = 11 : i64} {
  func.func @mamba_block_kernel(%arg0: i32, %arg1: memref<1x8x8xf32, #tpu.memory_space<vmem>>, %arg2: memref<8x16xf32, #tpu.memory_space<vmem>>, %arg3: memref<8x16xf32, #tpu.memory_space<vmem>>, %arg4: memref<4x16xf32, #tpu.memory_space<vmem>>, %arg5: memref<1x16xf32, #tpu.memory_space<vmem>>, %arg6: memref<16x1xf32, #tpu.memory_space<vmem>>, %arg7: memref<16x16xf32, #tpu.memory_space<vmem>>, %arg8: memref<16x16xf32, #tpu.memory_space<vmem>>, %arg9: memref<1x16xf32, #tpu.memory_space<vmem>>, %arg10: memref<1x16xf32, #tpu.memory_space<vmem>>, %arg11: memref<16x16xf32, #tpu.memory_space<vmem>>, %arg12: memref<1x16xf32, #tpu.memory_space<vmem>>, %arg13: memref<16x8xf32, #tpu.memory_space<vmem>>, %arg14: memref<1x8x8xf32, #tpu.memory_space<vmem>>, %arg15: memref<8x16x16xf32, #tpu.memory_space<vmem>>, %arg16: memref<8x16x16xf32, #tpu.memory_space<vmem>>, %arg17: memref<8x16xf32, #tpu.memory_space<vmem>>, %arg18: memref<8x16xf32, #tpu.memory_space<vmem>>) attributes {dimension_semantics = [#tpu.dimension_semantics<parallel>], iteration_bounds = array<i64: 2>, scalar_prefetch = 0 : i64, scratch_operands = 4 : i64, tpu.core_type = #tpu.core_type<tc>, window_params = [{transform_indices = @transform_0, window_bounds = array<i64: 1, 8, 8>}, {pipeline_mode = #tpu.pipeline_mode<synchronous>, transform_indices = @transform_1, window_bounds = array<i64: 8, 16>}, {pipeline_mode = #tpu.pipeline_mode<synchronous>, transform_indices = @transform_2, window_bounds = array<i64: 8, 16>}, {pipeline_mode = #tpu.pipeline_mode<synchronous>, transform_indices = @transform_3, window_bounds = array<i64: 4, 16>}, {pipeline_mode = #tpu.pipeline_mode<synchronous>, transform_indices = @transform_4, window_bounds = array<i64: 1, 16>}, {pipeline_mode = #tpu.pipeline_mode<synchronous>, transform_indices = @transform_5, window_bounds = array<i64: 16, 1>}, {pipeline_mode = #tpu.pipeline_mode<synchronous>, transform_indices = @transform_6, window_bounds = array<i64: 16, 16>}, {pipeline_mode = #tpu.pipeline_mode<synchronous>, transform_indices = @transform_7, window_bounds = array<i64: 16, 16>}, {pipeline_mode = #tpu.pipeline_mode<synchronous>, transform_indices = @transform_8, window_bounds = array<i64: 1, 16>}, {pipeline_mode = #tpu.pipeline_mode<synchronous>, transform_indices = @transform_9, window_bounds = array<i64: 1, 16>}, {pipeline_mode = #tpu.pipeline_mode<synchronous>, transform_indices = @transform_10, window_bounds = array<i64: 16, 16>}, {pipeline_mode = #tpu.pipeline_mode<synchronous>, transform_indices = @transform_11, window_bounds = array<i64: 1, 16>}, {pipeline_mode = #tpu.pipeline_mode<synchronous>, transform_indices = @transform_12, window_bounds = array<i64: 16, 8>}, {transform_indices = @transform_13, window_bounds = array<i64: 1, 8, 8>}]} {
    %c0 = arith.constant 0 : index
    %c0_0 = arith.constant 0 : index
    %c0_1 = arith.constant 0 : index
    %0 = vector.load %arg1[%c0, %c0_0, %c0_1] : memref<1x8x8xf32, #tpu.memory_space<vmem>>, vector<1x8x8xf32>
    %1 = vector.shape_cast %0 : vector<1x8x8xf32> to vector<8x8xf32>
    %c0_2 = arith.constant 0 : index
    %c0_3 = arith.constant 0 : index
    %2 = vector.load %arg2[%c0_2, %c0_3] : memref<8x16xf32, #tpu.memory_space<vmem>>, vector<8x16xf32>
    %cst = arith.constant dense<0.000000e+00> : vector<8x16xf32>
    %3 = tpu.matmul %1, %2, %cst {dimension_numbers = #tpu.dot_dimension_numbers<[1], [0], [0], [1], [0, 0, 1, 1], [], []>} : vector<8x8xf32>, vector<8x16xf32>, vector<8x16xf32> -> vector<8x16xf32>
    %c0_4 = arith.constant 0 : index
    %c0_5 = arith.constant 0 : index
    %4 = vector.load %arg3[%c0_4, %c0_5] : memref<8x16xf32, #tpu.memory_space<vmem>>, vector<8x16xf32>
    %cst_6 = arith.constant dense<0.000000e+00> : vector<8x16xf32>
    %5 = tpu.matmul %1, %4, %cst_6 {dimension_numbers = #tpu.dot_dimension_numbers<[1], [0], [0], [1], [0, 0, 1, 1], [], []>} : vector<8x8xf32>, vector<8x16xf32>, vector<8x16xf32> -> vector<8x16xf32>
    %6 = vector.shape_cast %3 : vector<8x16xf32> to vector<1x8x16xf32>
    %cst_7 = arith.constant 0.000000e+00 : f32
    %7 = vector.broadcast %cst_7 : f32 to vector<1x8x16xf32>
    %c0_8 = arith.constant 0 : index
    %c0_9 = arith.constant 0 : index
    %8 = vector.load %arg4[%c0_8, %c0_9] : memref<4x16xf32, #tpu.memory_space<vmem>>, vector<1x16xf32>
    %9 = vector.shape_cast %8 : vector<1x16xf32> to vector<16xf32>
    %10 = vector.shape_cast %9 : vector<16xf32> to vector<1x1x16xf32>
    %cst_10 = arith.constant 0.000000e+00 : f32
    %11 = vector.broadcast %cst_10 : f32 to vector<1x3x16xf32>
    %12 = vector.extract_strided_slice %6 {offsets = [0, 0, 0], sizes = [1, 5, 16], strides = [1, 1, 1]} : vector<1x8x16xf32> to vector<1x5x16xf32>
    %13 = tpu.concatenate %11, %12 in 1 : vector<1x3x16xf32>, vector<1x5x16xf32> -> vector<1x8x16xf32>
    %14 = vector.broadcast %10 : vector<1x1x16xf32> to vector<1x8x16xf32>
    %15 = arith.mulf %13, %14 : vector<1x8x16xf32>
    %16 = arith.addf %7, %15 : vector<1x8x16xf32>
    %c1 = arith.constant 1 : index
    %c0_11 = arith.constant 0 : index
    %17 = vector.load %arg4[%c1, %c0_11] : memref<4x16xf32, #tpu.memory_space<vmem>>, vector<1x16xf32>
    %18 = vector.shape_cast %17 : vector<1x16xf32> to vector<16xf32>
    %19 = vector.shape_cast %18 : vector<16xf32> to vector<1x1x16xf32>
    %cst_12 = arith.constant 0.000000e+00 : f32
    %20 = vector.broadcast %cst_12 : f32 to vector<1x2x16xf32>
    %21 = vector.extract_strided_slice %6 {offsets = [0, 0, 0], sizes = [1, 6, 16], strides = [1, 1, 1]} : vector<1x8x16xf32> to vector<1x6x16xf32>
    %22 = tpu.concatenate %20, %21 in 1 : vector<1x2x16xf32>, vector<1x6x16xf32> -> vector<1x8x16xf32>
    %23 = vector.broadcast %19 : vector<1x1x16xf32> to vector<1x8x16xf32>
    %24 = arith.mulf %22, %23 : vector<1x8x16xf32>
    %25 = arith.addf %16, %24 : vector<1x8x16xf32>
    %c2 = arith.constant 2 : index
    %c0_13 = arith.constant 0 : index
    %26 = vector.load %arg4[%c2, %c0_13] : memref<4x16xf32, #tpu.memory_space<vmem>>, vector<1x16xf32>
    %27 = vector.shape_cast %26 : vector<1x16xf32> to vector<16xf32>
    %28 = vector.shape_cast %27 : vector<16xf32> to vector<1x1x16xf32>
    %cst_14 = arith.constant 0.000000e+00 : f32
    %29 = vector.broadcast %cst_14 : f32 to vector<1x1x16xf32>
    %30 = vector.extract_strided_slice %6 {offsets = [0, 0, 0], sizes = [1, 7, 16], strides = [1, 1, 1]} : vector<1x8x16xf32> to vector<1x7x16xf32>
    %31 = tpu.concatenate %29, %30 in 1 : vector<1x1x16xf32>, vector<1x7x16xf32> -> vector<1x8x16xf32>
    %32 = vector.broadcast %28 : vector<1x1x16xf32> to vector<1x8x16xf32>
    %33 = arith.mulf %31, %32 : vector<1x8x16xf32>
    %34 = arith.addf %25, %33 : vector<1x8x16xf32>
    %c3 = arith.constant 3 : index
    %c0_15 = arith.constant 0 : index
    %35 = vector.load %arg4[%c3, %c0_15] : memref<4x16xf32, #tpu.memory_space<vmem>>, vector<1x16xf32>
    %36 = vector.shape_cast %35 : vector<1x16xf32> to vector<16xf32>
    %37 = vector.shape_cast %36 : vector<16xf32> to vector<1x1x16xf32>
    %38 = vector.broadcast %37 : vector<1x1x16xf32> to vector<1x8x16xf32>
    %39 = arith.mulf %6, %38 : vector<1x8x16xf32>
    %40 = arith.addf %34, %39 : vector<1x8x16xf32>
    %41 = vector.shape_cast %40 : vector<1x8x16xf32> to vector<8x16xf32>
    %c0_16 = arith.constant 0 : index
    %c0_17 = arith.constant 0 : index
    %42 = vector.load %arg5[%c0_16, %c0_17] : memref<1x16xf32, #tpu.memory_space<vmem>>, vector<1x16xf32>
    %43 = vector.broadcast %42 : vector<1x16xf32> to vector<8x16xf32>
    %44 = arith.addf %41, %43 : vector<8x16xf32>
    %45 = arith.negf %44 : vector<8x16xf32>
    %46 = math.exp %45 : vector<8x16xf32>
    %cst_18 = arith.constant 1.000000e+00 : f32
    %47 = vector.broadcast %cst_18 : f32 to vector<8x16xf32>
    %48 = arith.addf %47, %46 : vector<8x16xf32>
    %49 = arith.divf %47, %48 : vector<8x16xf32>
    %50 = arith.mulf %44, %49 : vector<8x16xf32>
    %c0_19 = arith.constant 0 : index
    %c0_20 = arith.constant 0 : index
    %51 = vector.load %arg6[%c0_19, %c0_20] : memref<16x1xf32, #tpu.memory_space<vmem>>, vector<16x1xf32>
    %cst_21 = arith.constant dense<0.000000e+00> : vector<8x1xf32>
    %52 = tpu.matmul %50, %51, %cst_21 {dimension_numbers = #tpu.dot_dimension_numbers<[1], [0], [0], [1], [0, 0, 1, 1], [], []>} : vector<8x16xf32>, vector<16x1xf32>, vector<8x1xf32> -> vector<8x1xf32>
    %c0_22 = arith.constant 0 : index
    %c0_23 = arith.constant 0 : index
    %53 = vector.load %arg7[%c0_22, %c0_23] : memref<16x16xf32, #tpu.memory_space<vmem>>, vector<16x16xf32>
    %cst_24 = arith.constant dense<0.000000e+00> : vector<8x16xf32>
    %54 = tpu.matmul %50, %53, %cst_24 {dimension_numbers = #tpu.dot_dimension_numbers<[1], [0], [0], [1], [0, 0, 1, 1], [], []>} : vector<8x16xf32>, vector<16x16xf32>, vector<8x16xf32> -> vector<8x16xf32>
    %c0_25 = arith.constant 0 : index
    %c0_26 = arith.constant 0 : index
    %55 = vector.load %arg8[%c0_25, %c0_26] : memref<16x16xf32, #tpu.memory_space<vmem>>, vector<16x16xf32>
    %cst_27 = arith.constant dense<0.000000e+00> : vector<8x16xf32>
    %56 = tpu.matmul %50, %55, %cst_27 {dimension_numbers = #tpu.dot_dimension_numbers<[1], [0], [0], [1], [0, 0, 1, 1], [], []>} : vector<8x16xf32>, vector<16x16xf32>, vector<8x16xf32> -> vector<8x16xf32>
    %c0_28 = arith.constant 0 : index
    %c0_29 = arith.constant 0 : index
    %57 = vector.load %arg9[%c0_28, %c0_29] : memref<1x16xf32, #tpu.memory_space<vmem>>, vector<1x16xf32>
    %cst_30 = arith.constant dense<0.000000e+00> : vector<8x16xf32>
    %58 = tpu.matmul %52, %57, %cst_30 {dimension_numbers = #tpu.dot_dimension_numbers<[1], [0], [0], [1], [0, 0, 1, 1], [], []>} : vector<8x1xf32>, vector<1x16xf32>, vector<8x16xf32> -> vector<8x16xf32>
    %c0_31 = arith.constant 0 : index
    %c0_32 = arith.constant 0 : index
    %59 = vector.load %arg10[%c0_31, %c0_32] : memref<1x16xf32, #tpu.memory_space<vmem>>, vector<1x16xf32>
    %60 = vector.broadcast %59 : vector<1x16xf32> to vector<8x16xf32>
    %61 = arith.addf %58, %60 : vector<8x16xf32>
    %cst_33 = arith.constant 0.000000e+00 : f32
    %62 = vector.broadcast %cst_33 : f32 to vector<8x16xf32>
    %63 = arith.maximumf %61, %62 : vector<8x16xf32>
    %64 = vector.broadcast %cst_33 : f32 to vector<8x16xf32>
    %65 = arith.subf %61, %64 : vector<8x16xf32>
    %66 = arith.cmpf one, %65, %65 : vector<8x16xf32>
    %67 = vector.broadcast %cst_33 : f32 to vector<8x16xf32>
    %68 = arith.addf %61, %67 : vector<8x16xf32>
    %69 = math.absf %65 : vector<8x16xf32>
    %cst_34 = arith.constant 0.000000e+00 : f32
    %70 = vector.broadcast %cst_34 : f32 to vector<8x16xf32>
    %71 = arith.subf %70, %69 : vector<8x16xf32>
    %72 = math.exp %71 : vector<8x16xf32>
    %73 = math.log1p %72 : vector<8x16xf32>
    %74 = arith.addf %63, %73 : vector<8x16xf32>
    %75 = arith.select %66, %68, %74 : vector<8x16xi1>, vector<8x16xf32>
    %76 = arith.mulf %75, %50 : vector<8x16xf32>
    %c0_35 = arith.constant 0 : index
    %c0_36 = arith.constant 0 : index
    %77 = vector.load %arg11[%c0_35, %c0_36] : memref<16x16xf32, #tpu.memory_space<vmem>>, vector<16x16xf32>
    %c0_37 = arith.constant 0 : index
    %c0_38 = arith.constant 0 : index
    %78 = vector.load %arg17[%c0_37, %c0_38] : memref<8x16xf32, #tpu.memory_space<vmem>>, vector<8x16xf32>
    tpu.vector_store %arg17[%c0_37, %c0_38], %56 {strides = array<i32>} : memref<8x16xf32, #tpu.memory_space<vmem>>, vector<8x16xf32>,
    %79 = vector.shape_cast %75 : vector<8x16xf32> to vector<8x1x16xf32>
    %80 = vector.shape_cast %77 : vector<16x16xf32> to vector<1x16x16xf32>
    %81 = vector.broadcast %79 : vector<8x1x16xf32> to vector<8x16x16xf32>
    %82 = vector.broadcast %80 : vector<1x16x16xf32> to vector<8x16x16xf32>
    %83 = arith.mulf %81, %82 : vector<8x16x16xf32>
    %84 = math.exp %83 : vector<8x16x16xf32>
    %c0_39 = arith.constant 0 : index
    %c0_40 = arith.constant 0 : index
    %c0_41 = arith.constant 0 : index
    %85 = vector.load %arg15[%c0_39, %c0_40, %c0_41] : memref<8x16x16xf32, #tpu.memory_space<vmem>>, vector<8x16x16xf32>
    tpu.vector_store %arg15[%c0_39, %c0_40, %c0_41], %84 {strides = array<i32>} : memref<8x16x16xf32, #tpu.memory_space<vmem>>, vector<8x16x16xf32>,
    %86 = vector.shape_cast %54 : vector<8x16xf32> to vector<8x16x1xf32>
    %87 = vector.shape_cast %76 : vector<8x16xf32> to vector<8x1x16xf32>
    %88 = vector.broadcast %86 : vector<8x16x1xf32> to vector<8x16x16xf32>
    %89 = vector.broadcast %87 : vector<8x1x16xf32> to vector<8x16x16xf32>
    %90 = arith.mulf %88, %89 : vector<8x16x16xf32>
    %c0_42 = arith.constant 0 : index
    %c0_43 = arith.constant 0 : index
    %c0_44 = arith.constant 0 : index
    %91 = vector.load %arg16[%c0_42, %c0_43, %c0_44] : memref<8x16x16xf32, #tpu.memory_space<vmem>>, vector<8x16x16xf32>
    tpu.vector_store %arg16[%c0_42, %c0_43, %c0_44], %90 {strides = array<i32>} : memref<8x16x16xf32, #tpu.memory_space<vmem>>, vector<8x16x16xf32>,
    %cst_45 = arith.constant 0.000000e+00 : f32
    %92 = vector.broadcast %cst_45 : f32 to vector<16x16xf32>
    %c0_i32 = arith.constant 0 : i32
    %c0_i32_46 = arith.constant 0 : i32
    %93 = arith.addi %c0_i32_46, %c0_i32 : i32
    %94 = arith.index_cast %93 : i32 to index
    %c0_47 = arith.constant 0 : index
    %c0_48 = arith.constant 0 : index
    %95 = vector.load %arg15[%94, %c0_47, %c0_48] : memref<8x16x16xf32, #tpu.memory_space<vmem>>, vector<1x16x16xf32>
    %96 = vector.shape_cast %95 : vector<1x16x16xf32> to vector<16x16xf32>
    %97 = arith.mulf %96, %92 : vector<16x16xf32>
    %98 = arith.index_cast %93 : i32 to index
    %c0_49 = arith.constant 0 : index
    %c0_50 = arith.constant 0 : index
    %99 = vector.load %arg16[%98, %c0_49, %c0_50] : memref<8x16x16xf32, #tpu.memory_space<vmem>>, vector<1x16x16xf32>
    %100 = vector.shape_cast %99 : vector<1x16x16xf32> to vector<16x16xf32>
    %101 = arith.addf %97, %100 : vector<16x16xf32>
    %102 = arith.index_cast %93 : i32 to index
    %c0_51 = arith.constant 0 : index
    %103 = vector.load %arg17[%102, %c0_51] : memref<8x16xf32, #tpu.memory_space<vmem>>, vector<1x16xf32>
    %104 = vector.shape_cast %103 : vector<1x16xf32> to vector<16xf32>
    %105 = vector.shape_cast %104 : vector<16xf32> to vector<16x1xf32>
    %106 = vector.broadcast %105 : vector<16x1xf32> to vector<16x16xf32>
    %107 = arith.mulf %106, %101 : vector<16x16xf32>
    %cst_52 = arith.constant dense<0.000000e+00> : vector<16xf32>
    %108 = vector.multi_reduction <add>, %107, %cst_52 [0] : vector<16x16xf32> to vector<16xf32>
    %109 = arith.index_cast %93 : i32 to index
    %c0_53 = arith.constant 0 : index
    %110 = vector.load %arg18[%109, %c0_53] : memref<8x16xf32, #tpu.memory_space<vmem>>, vector<1x16xf32>
    %111 = vector.shape_cast %110 : vector<1x16xf32> to vector<16xf32>
    %112 = vector.shape_cast %108 : vector<16xf32> to vector<1x16xf32>
    tpu.vector_store %arg18[%109, %c0_53], %112 {strides = array<i32>} : memref<8x16xf32, #tpu.memory_space<vmem>>, vector<1x16xf32>,
    %c1_i32 = arith.constant 1 : i32
    %c0_i32_54 = arith.constant 0 : i32
    %113 = arith.addi %c0_i32_54, %c1_i32 : i32
    %114 = arith.index_cast %113 : i32 to index
    %c0_55 = arith.constant 0 : index
    %c0_56 = arith.constant 0 : index
    %115 = vector.load %arg15[%114, %c0_55, %c0_56] : memref<8x16x16xf32, #tpu.memory_space<vmem>>, vector<1x16x16xf32>
    %116 = vector.shape_cast %115 : vector<1x16x16xf32> to vector<16x16xf32>
    %117 = arith.mulf %116, %101 : vector<16x16xf32>
    %118 = arith.index_cast %113 : i32 to index
    %c0_57 = arith.constant 0 : index
    %c0_58 = arith.constant 0 : index
    %119 = vector.load %arg16[%118, %c0_57, %c0_58] : memref<8x16x16xf32, #tpu.memory_space<vmem>>, vector<1x16x16xf32>
    %120 = vector.shape_cast %119 : vector<1x16x16xf32> to vector<16x16xf32>
    %121 = arith.addf %117, %120 : vector<16x16xf32>
    %122 = arith.index_cast %113 : i32 to index
    %c0_59 = arith.constant 0 : index
    %123 = vector.load %arg17[%122, %c0_59] : memref<8x16xf32, #tpu.memory_space<vmem>>, vector<1x16xf32>
    %124 = vector.shape_cast %123 : vector<1x16xf32> to vector<16xf32>
    %125 = vector.shape_cast %124 : vector<16xf32> to vector<16x1xf32>
    %126 = vector.broadcast %125 : vector<16x1xf32> to vector<16x16xf32>
    %127 = arith.mulf %126, %121 : vector<16x16xf32>
    %cst_60 = arith.constant dense<0.000000e+00> : vector<16xf32>
    %128 = vector.multi_reduction <add>, %127, %cst_60 [0] : vector<16x16xf32> to vector<16xf32>
    %129 = arith.index_cast %113 : i32 to index
    %c0_61 = arith.constant 0 : index
    %130 = vector.load %arg18[%129, %c0_61] : memref<8x16xf32, #tpu.memory_space<vmem>>, vector<1x16xf32>
    %131 = vector.shape_cast %130 : vector<1x16xf32> to vector<16xf32>
    %132 = vector.shape_cast %128 : vector<16xf32> to vector<1x16xf32>
    tpu.vector_store %arg18[%129, %c0_61], %132 {strides = array<i32>} : memref<8x16xf32, #tpu.memory_space<vmem>>, vector<1x16xf32>,
    %c2_i32 = arith.constant 2 : i32
    %c0_i32_62 = arith.constant 0 : i32
    %133 = arith.addi %c0_i32_62, %c2_i32 : i32
    %134 = arith.index_cast %133 : i32 to index
    %c0_63 = arith.constant 0 : index
    %c0_64 = arith.constant 0 : index
    %135 = vector.load %arg15[%134, %c0_63, %c0_64] : memref<8x16x16xf32, #tpu.memory_space<vmem>>, vector<1x16x16xf32>
    %136 = vector.shape_cast %135 : vector<1x16x16xf32> to vector<16x16xf32>
    %137 = arith.mulf %136, %121 : vector<16x16xf32>
    %138 = arith.index_cast %133 : i32 to index
    %c0_65 = arith.constant 0 : index
    %c0_66 = arith.constant 0 : index
    %139 = vector.load %arg16[%138, %c0_65, %c0_66] : memref<8x16x16xf32, #tpu.memory_space<vmem>>, vector<1x16x16xf32>
    %140 = vector.shape_cast %139 : vector<1x16x16xf32> to vector<16x16xf32>
    %141 = arith.addf %137, %140 : vector<16x16xf32>
    %142 = arith.index_cast %133 : i32 to index
    %c0_67 = arith.constant 0 : index
    %143 = vector.load %arg17[%142, %c0_67] : memref<8x16xf32, #tpu.memory_space<vmem>>, vector<1x16xf32>
    %144 = vector.shape_cast %143 : vector<1x16xf32> to vector<16xf32>
    %145 = vector.shape_cast %144 : vector<16xf32> to vector<16x1xf32>
    %146 = vector.broadcast %145 : vector<16x1xf32> to vector<16x16xf32>
    %147 = arith.mulf %146, %141 : vector<16x16xf32>
    %cst_68 = arith.constant dense<0.000000e+00> : vector<16xf32>
    %148 = vector.multi_reduction <add>, %147, %cst_68 [0] : vector<16x16xf32> to vector<16xf32>
    %149 = arith.index_cast %133 : i32 to index
    %c0_69 = arith.constant 0 : index
    %150 = vector.load %arg18[%149, %c0_69] : memref<8x16xf32, #tpu.memory_space<vmem>>, vector<1x16xf32>
    %151 = vector.shape_cast %150 : vector<1x16xf32> to vector<16xf32>
    %152 = vector.shape_cast %148 : vector<16xf32> to vector<1x16xf32>
    tpu.vector_store %arg18[%149, %c0_69], %152 {strides = array<i32>} : memref<8x16xf32, #tpu.memory_space<vmem>>, vector<1x16xf32>,
    %c3_i32 = arith.constant 3 : i32
    %c0_i32_70 = arith.constant 0 : i32
    %153 = arith.addi %c0_i32_70, %c3_i32 : i32
    %154 = arith.index_cast %153 : i32 to index
    %c0_71 = arith.constant 0 : index
    %c0_72 = arith.constant 0 : index
    %155 = vector.load %arg15[%154, %c0_71, %c0_72] : memref<8x16x16xf32, #tpu.memory_space<vmem>>, vector<1x16x16xf32>
    %156 = vector.shape_cast %155 : vector<1x16x16xf32> to vector<16x16xf32>
    %157 = arith.mulf %156, %141 : vector<16x16xf32>
    %158 = arith.index_cast %153 : i32 to index
    %c0_73 = arith.constant 0 : index
    %c0_74 = arith.constant 0 : index
    %159 = vector.load %arg16[%158, %c0_73, %c0_74] : memref<8x16x16xf32, #tpu.memory_space<vmem>>, vector<1x16x16xf32>
    %160 = vector.shape_cast %159 : vector<1x16x16xf32> to vector<16x16xf32>
    %161 = arith.addf %157, %160 : vector<16x16xf32>
    %162 = arith.index_cast %153 : i32 to index
    %c0_75 = arith.constant 0 : index
    %163 = vector.load %arg17[%162, %c0_75] : memref<8x16xf32, #tpu.memory_space<vmem>>, vector<1x16xf32>
    %164 = vector.shape_cast %163 : vector<1x16xf32> to vector<16xf32>
    %165 = vector.shape_cast %164 : vector<16xf32> to vector<16x1xf32>
    %166 = vector.broadcast %165 : vector<16x1xf32> to vector<16x16xf32>
    %167 = arith.mulf %166, %161 : vector<16x16xf32>
    %cst_76 = arith.constant dense<0.000000e+00> : vector<16xf32>
    %168 = vector.multi_reduction <add>, %167, %cst_76 [0] : vector<16x16xf32> to vector<16xf32>
    %169 = arith.index_cast %153 : i32 to index
    %c0_77 = arith.constant 0 : index
    %170 = vector.load %arg18[%169, %c0_77] : memref<8x16xf32, #tpu.memory_space<vmem>>, vector<1x16xf32>
    %171 = vector.shape_cast %170 : vector<1x16xf32> to vector<16xf32>
    %172 = vector.shape_cast %168 : vector<16xf32> to vector<1x16xf32>
    tpu.vector_store %arg18[%169, %c0_77], %172 {strides = array<i32>} : memref<8x16xf32, #tpu.memory_space<vmem>>, vector<1x16xf32>,
    %c4_i32 = arith.constant 4 : i32
    %c0_i32_78 = arith.constant 0 : i32
    %173 = arith.addi %c0_i32_78, %c4_i32 : i32
    %174 = arith.index_cast %173 : i32 to index
    %c0_79 = arith.constant 0 : index
    %c0_80 = arith.constant 0 : index
    %175 = vector.load %arg15[%174, %c0_79, %c0_80] : memref<8x16x16xf32, #tpu.memory_space<vmem>>, vector<1x16x16xf32>
    %176 = vector.shape_cast %175 : vector<1x16x16xf32> to vector<16x16xf32>
    %177 = arith.mulf %176, %161 : vector<16x16xf32>
    %178 = arith.index_cast %173 : i32 to index
    %c0_81 = arith.constant 0 : index
    %c0_82 = arith.constant 0 : index
    %179 = vector.load %arg16[%178, %c0_81, %c0_82] : memref<8x16x16xf32, #tpu.memory_space<vmem>>, vector<1x16x16xf32>
    %180 = vector.shape_cast %179 : vector<1x16x16xf32> to vector<16x16xf32>
    %181 = arith.addf %177, %180 : vector<16x16xf32>
    %182 = arith.index_cast %173 : i32 to index
    %c0_83 = arith.constant 0 : index
    %183 = vector.load %arg17[%182, %c0_83] : memref<8x16xf32, #tpu.memory_space<vmem>>, vector<1x16xf32>
    %184 = vector.shape_cast %183 : vector<1x16xf32> to vector<16xf32>
    %185 = vector.shape_cast %184 : vector<16xf32> to vector<16x1xf32>
    %186 = vector.broadcast %185 : vector<16x1xf32> to vector<16x16xf32>
    %187 = arith.mulf %186, %181 : vector<16x16xf32>
    %cst_84 = arith.constant dense<0.000000e+00> : vector<16xf32>
    %188 = vector.multi_reduction <add>, %187, %cst_84 [0] : vector<16x16xf32> to vector<16xf32>
    %189 = arith.index_cast %173 : i32 to index
    %c0_85 = arith.constant 0 : index
    %190 = vector.load %arg18[%189, %c0_85] : memref<8x16xf32, #tpu.memory_space<vmem>>, vector<1x16xf32>
    %191 = vector.shape_cast %190 : vector<1x16xf32> to vector<16xf32>
    %192 = vector.shape_cast %188 : vector<16xf32> to vector<1x16xf32>
    tpu.vector_store %arg18[%189, %c0_85], %192 {strides = array<i32>} : memref<8x16xf32, #tpu.memory_space<vmem>>, vector<1x16xf32>,
    %c5_i32 = arith.constant 5 : i32
    %c0_i32_86 = arith.constant 0 : i32
    %193 = arith.addi %c0_i32_86, %c5_i32 : i32
    %194 = arith.index_cast %193 : i32 to index
    %c0_87 = arith.constant 0 : index
    %c0_88 = arith.constant 0 : index
    %195 = vector.load %arg15[%194, %c0_87, %c0_88] : memref<8x16x16xf32, #tpu.memory_space<vmem>>, vector<1x16x16xf32>
    %196 = vector.shape_cast %195 : vector<1x16x16xf32> to vector<16x16xf32>
    %197 = arith.mulf %196, %181 : vector<16x16xf32>
    %198 = arith.index_cast %193 : i32 to index
    %c0_89 = arith.constant 0 : index
    %c0_90 = arith.constant 0 : index
    %199 = vector.load %arg16[%198, %c0_89, %c0_90] : memref<8x16x16xf32, #tpu.memory_space<vmem>>, vector<1x16x16xf32>
    %200 = vector.shape_cast %199 : vector<1x16x16xf32> to vector<16x16xf32>
    %201 = arith.addf %197, %200 : vector<16x16xf32>
    %202 = arith.index_cast %193 : i32 to index
    %c0_91 = arith.constant 0 : index
    %203 = vector.load %arg17[%202, %c0_91] : memref<8x16xf32, #tpu.memory_space<vmem>>, vector<1x16xf32>
    %204 = vector.shape_cast %203 : vector<1x16xf32> to vector<16xf32>
    %205 = vector.shape_cast %204 : vector<16xf32> to vector<16x1xf32>
    %206 = vector.broadcast %205 : vector<16x1xf32> to vector<16x16xf32>
    %207 = arith.mulf %206, %201 : vector<16x16xf32>
    %cst_92 = arith.constant dense<0.000000e+00> : vector<16xf32>
    %208 = vector.multi_reduction <add>, %207, %cst_92 [0] : vector<16x16xf32> to vector<16xf32>
    %209 = arith.index_cast %193 : i32 to index
    %c0_93 = arith.constant 0 : index
    %210 = vector.load %arg18[%209, %c0_93] : memref<8x16xf32, #tpu.memory_space<vmem>>, vector<1x16xf32>
    %211 = vector.shape_cast %210 : vector<1x16xf32> to vector<16xf32>
    %212 = vector.shape_cast %208 : vector<16xf32> to vector<1x16xf32>
    tpu.vector_store %arg18[%209, %c0_93], %212 {strides = array<i32>} : memref<8x16xf32, #tpu.memory_space<vmem>>, vector<1x16xf32>,
    %c6_i32 = arith.constant 6 : i32
    %c0_i32_94 = arith.constant 0 : i32
    %213 = arith.addi %c0_i32_94, %c6_i32 : i32
    %214 = arith.index_cast %213 : i32 to index
    %c0_95 = arith.constant 0 : index
    %c0_96 = arith.constant 0 : index
    %215 = vector.load %arg15[%214, %c0_95, %c0_96] : memref<8x16x16xf32, #tpu.memory_space<vmem>>, vector<1x16x16xf32>
    %216 = vector.shape_cast %215 : vector<1x16x16xf32> to vector<16x16xf32>
    %217 = arith.mulf %216, %201 : vector<16x16xf32>
    %218 = arith.index_cast %213 : i32 to index
    %c0_97 = arith.constant 0 : index
    %c0_98 = arith.constant 0 : index
    %219 = vector.load %arg16[%218, %c0_97, %c0_98] : memref<8x16x16xf32, #tpu.memory_space<vmem>>, vector<1x16x16xf32>
    %220 = vector.shape_cast %219 : vector<1x16x16xf32> to vector<16x16xf32>
    %221 = arith.addf %217, %220 : vector<16x16xf32>
    %222 = arith.index_cast %213 : i32 to index
    %c0_99 = arith.constant 0 : index
    %223 = vector.load %arg17[%222, %c0_99] : memref<8x16xf32, #tpu.memory_space<vmem>>, vector<1x16xf32>
    %224 = vector.shape_cast %223 : vector<1x16xf32> to vector<16xf32>
    %225 = vector.shape_cast %224 : vector<16xf32> to vector<16x1xf32>
    %226 = vector.broadcast %225 : vector<16x1xf32> to vector<16x16xf32>
    %227 = arith.mulf %226, %221 : vector<16x16xf32>
    %cst_100 = arith.constant dense<0.000000e+00> : vector<16xf32>
    %228 = vector.multi_reduction <add>, %227, %cst_100 [0] : vector<16x16xf32> to vector<16xf32>
    %229 = arith.index_cast %213 : i32 to index
    %c0_101 = arith.constant 0 : index
    %230 = vector.load %arg18[%229, %c0_101] : memref<8x16xf32, #tpu.memory_space<vmem>>, vector<1x16xf32>
    %231 = vector.shape_cast %230 : vector<1x16xf32> to vector<16xf32>
    %232 = vector.shape_cast %228 : vector<16xf32> to vector<1x16xf32>
    tpu.vector_store %arg18[%229, %c0_101], %232 {strides = array<i32>} : memref<8x16xf32, #tpu.memory_space<vmem>>, vector<1x16xf32>,
    %c7_i32 = arith.constant 7 : i32
    %c0_i32_102 = arith.constant 0 : i32
    %233 = arith.addi %c0_i32_102, %c7_i32 : i32
    %234 = arith.index_cast %233 : i32 to index
    %c0_103 = arith.constant 0 : index
    %c0_104 = arith.constant 0 : index
    %235 = vector.load %arg15[%234, %c0_103, %c0_104] : memref<8x16x16xf32, #tpu.memory_space<vmem>>, vector<1x16x16xf32>
    %236 = vector.shape_cast %235 : vector<1x16x16xf32> to vector<16x16xf32>
    %237 = arith.mulf %236, %221 : vector<16x16xf32>
    %238 = arith.index_cast %233 : i32 to index
    %c0_105 = arith.constant 0 : index
    %c0_106 = arith.constant 0 : index
    %239 = vector.load %arg16[%238, %c0_105, %c0_106] : memref<8x16x16xf32, #tpu.memory_space<vmem>>, vector<1x16x16xf32>
    %240 = vector.shape_cast %239 : vector<1x16x16xf32> to vector<16x16xf32>
    %241 = arith.addf %237, %240 : vector<16x16xf32>
    %242 = arith.index_cast %233 : i32 to index
    %c0_107 = arith.constant 0 : index
    %243 = vector.load %arg17[%242, %c0_107] : memref<8x16xf32, #tpu.memory_space<vmem>>, vector<1x16xf32>
    %244 = vector.shape_cast %243 : vector<1x16xf32> to vector<16xf32>
    %245 = vector.shape_cast %244 : vector<16xf32> to vector<16x1xf32>
    %246 = vector.broadcast %245 : vector<16x1xf32> to vector<16x16xf32>
    %247 = arith.mulf %246, %241 : vector<16x16xf32>
    %cst_108 = arith.constant dense<0.000000e+00> : vector<16xf32>
    %248 = vector.multi_reduction <add>, %247, %cst_108 [0] : vector<16x16xf32> to vector<16xf32>
    %249 = arith.index_cast %233 : i32 to index
    %c0_109 = arith.constant 0 : index
    %250 = vector.load %arg18[%249, %c0_109] : memref<8x16xf32, #tpu.memory_space<vmem>>, vector<1x16xf32>
    %251 = vector.shape_cast %250 : vector<1x16xf32> to vector<16xf32>
    %252 = vector.shape_cast %248 : vector<16xf32> to vector<1x16xf32>
    tpu.vector_store %arg18[%249, %c0_109], %252 {strides = array<i32>} : memref<8x16xf32, #tpu.memory_space<vmem>>, vector<1x16xf32>,
    %c8_i32 = arith.constant 8 : i32
    %c0_110 = arith.constant 0 : index
    %c0_111 = arith.constant 0 : index
    %253 = vector.load %arg18[%c0_110, %c0_111] : memref<8x16xf32, #tpu.memory_space<vmem>>, vector<8x16xf32>
    %c0_112 = arith.constant 0 : index
    %c0_113 = arith.constant 0 : index
    %254 = vector.load %arg12[%c0_112, %c0_113] : memref<1x16xf32, #tpu.memory_space<vmem>>, vector<1x16xf32>
    %255 = vector.broadcast %254 : vector<1x16xf32> to vector<8x16xf32>
    %256 = arith.mulf %50, %255 : vector<8x16xf32>
    %257 = arith.addf %253, %256 : vector<8x16xf32>
    %258 = arith.negf %5 : vector<8x16xf32>
    %259 = math.exp %258 : vector<8x16xf32>
    %cst_114 = arith.constant 1.000000e+00 : f32
    %260 = vector.broadcast %cst_114 : f32 to vector<8x16xf32>
    %261 = arith.addf %260, %259 : vector<8x16xf32>
    %262 = arith.divf %260, %261 : vector<8x16xf32>
    %263 = arith.mulf %5, %262 : vector<8x16xf32>
    %264 = arith.mulf %257, %263 : vector<8x16xf32>
    %c0_115 = arith.constant 0 : index
    %c0_116 = arith.constant 0 : index
    %265 = vector.load %arg13[%c0_115, %c0_116] : memref<16x8xf32, #tpu.memory_space<vmem>>, vector<16x8xf32>
    %cst_117 = arith.constant dense<0.000000e+00> : vector<8x8xf32>
    %266 = tpu.matmul %264, %265, %cst_117 {dimension_numbers = #tpu.dot_dimension_numbers<[1], [0], [0], [1], [0, 0, 1, 1], [], []>} : vector<8x16xf32>, vector<16x8xf32>, vector<8x8xf32> -> vector<8x8xf32>
    %267 = vector.shape_cast %266 : vector<8x8xf32> to vector<1x8x8xf32>
    %c0_118 = arith.constant 0 : index
    %c0_119 = arith.constant 0 : index
    %c0_120 = arith.constant 0 : index
    %268 = vector.load %arg14[%c0_118, %c0_119, %c0_120] : memref<1x8x8xf32, #tpu.memory_space<vmem>>, vector<1x8x8xf32>
    tpu.vector_store %arg14[%c0_118, %c0_119, %c0_120], %267 {strides = array<i32>} : memref<1x8x8xf32, #tpu.memory_space<vmem>>, vector<1x8x8xf32>,
    return
  }
  func.func @transform_0(%arg0: i32) -> (i32, i32, i32) {
    %c0_i32 = arith.constant 0 : i32
    %c0_i32_0 = arith.constant 0 : i32
    %c0_i32_1 = arith.constant 0 : i32
    return %arg0, %c0_i32, %c0_i32_0 : i32, i32, i32
  }
  func.func @transform_1(%arg0: i32) -> (i32, i32) {
    %c0_i32 = arith.constant 0 : i32
    %c0_i32_0 = arith.constant 0 : i32
    %c0_i32_1 = arith.constant 0 : i32
    return %c0_i32, %c0_i32_0 : i32, i32
  }
  func.func @transform_2(%arg0: i32) -> (i32, i32) {
    %c0_i32 = arith.constant 0 : i32
    %c0_i32_0 = arith.constant 0 : i32
    %c0_i32_1 = arith.constant 0 : i32
    return %c0_i32, %c0_i32_0 : i32, i32
  }
  func.func @transform_3(%arg0: i32) -> (i32, i32) {
    %c0_i32 = arith.constant 0 : i32
    %c0_i32_0 = arith.constant 0 : i32
    %c0_i32_1 = arith.constant 0 : i32
    return %c0_i32, %c0_i32_0 : i32, i32
  }
  func.func @transform_4(%arg0: i32) -> (i32, i32) {
    %c0_i32 = arith.constant 0 : i32
    %c0_i32_0 = arith.constant 0 : i32
    %c0_i32_1 = arith.constant 0 : i32
    return %c0_i32, %c0_i32_0 : i32, i32
  }
  func.func @transform_5(%arg0: i32) -> (i32, i32) {
    %c0_i32 = arith.constant 0 : i32
    %c0_i32_0 = arith.constant 0 : i32
    %c0_i32_1 = arith.constant 0 : i32
    return %c0_i32, %c0_i32_0 : i32, i32
  }
  func.func @transform_6(%arg0: i32) -> (i32, i32) {
    %c0_i32 = arith.constant 0 : i32
    %c0_i32_0 = arith.constant 0 : i32
    %c0_i32_1 = arith.constant 0 : i32
    return %c0_i32, %c0_i32_0 : i32, i32
  }
  func.func @transform_7(%arg0: i32) -> (i32, i32) {
    %c0_i32 = arith.constant 0 : i32
    %c0_i32_0 = arith.constant 0 : i32
    %c0_i32_1 = arith.constant 0 : i32
    return %c0_i32, %c0_i32_0 : i32, i32
  }
  func.func @transform_8(%arg0: i32) -> (i32, i32) {
    %c0_i32 = arith.constant 0 : i32
    %c0_i32_0 = arith.constant 0 : i32
    %c0_i32_1 = arith.constant 0 : i32
    return %c0_i32, %c0_i32_0 : i32, i32
  }
  func.func @transform_9(%arg0: i32) -> (i32, i32) {
    %c0_i32 = arith.constant 0 : i32
    %c0_i32_0 = arith.constant 0 : i32
    %c0_i32_1 = arith.constant 0 : i32
    return %c0_i32, %c0_i32_0 : i32, i32
  }
  func.func @transform_10(%arg0: i32) -> (i32, i32) {
    %c0_i32 = arith.constant 0 : i32
    %c0_i32_0 = arith.constant 0 : i32
    %c0_i32_1 = arith.constant 0 : i32
    return %c0_i32, %c0_i32_0 : i32, i32
  }
  func.func @transform_11(%arg0: i32) -> (i32, i32) {
    %c0_i32 = arith.constant 0 : i32
    %c0_i32_0 = arith.constant 0 : i32
    %c0_i32_1 = arith.constant 0 : i32
    return %c0_i32, %c0_i32_0 : i32, i32
  }
  func.func @transform_12(%arg0: i32) -> (i32, i32) {
    %c0_i32 = arith.constant 0 : i32
    %c0_i32_0 = arith.constant 0 : i32
    %c0_i32_1 = arith.constant 0 : i32
    return %c0_i32, %c0_i32_0 : i32, i32
  }
  func.func @transform_13(%arg0: i32) -> (i32, i32, i32) {
    %c0_i32 = arith.constant 0 : i32
    %c0_i32_0 = arith.constant 0 : i32
    %c0_i32_1 = arith.constant 0 : i32
    return %arg0, %c0_i32, %c0_i32_0 : i32, i32, i32
  }
}

</mosaic_0001>

<llo_original>
// kernel: tpu_custom_call.1
$region0: #{tpu_custom_call.1}
  #allocation0 [shape = 'u32[]', space=smem, size = 0x4, offset = 0x4, fixed_abs, tag = 'smem constant byte address 0x4 - core index']
  #allocation1 [shape = 'u32[144,128]{1,0:T(1,128)}', space=vmem, size = 0x12000, scoped, tag = 'internal scratch']
  #allocation2 [shape = 'f32[8,16,16]{2,1,0:T(8,128)}', space=vmem, size = 0x10000, scoped, tag = 'scratch operand']
  #allocation3 [shape = 'f32[8,16,16]{2,1,0:T(8,128)}', space=vmem, size = 0x10000, scoped, tag = 'scratch operand']
  #allocation4 [shape = 'f32[8,16]{1,0:T(8,128)}', space=vmem, size = 0x1000, scoped, tag = 'scratch operand']
  #allocation5 [shape = 'f32[8,16]{1,0:T(8,128)}', space=vmem, size = 0x1000, scoped, tag = 'scratch operand']
  %s0 = inlined_call_operand.vmem [shape: f32[2,8,8], index: 0, kind: input, shape index: {}]
  %s1 = inlined_call_operand.hbm [shape: f32[8,16], index: 1, kind: input, shape index: {}]
  %s2 = inlined_call_operand.hbm [shape: f32[8,16], index: 2, kind: input, shape index: {}]
  %s3 = inlined_call_operand.hbm [shape: f32[4,16], index: 3, kind: input, shape index: {}]
  %s4 = inlined_call_operand.vmem [shape: f32[1,16], index: 4, kind: input, shape index: {}]
  %s5 = inlined_call_operand.vmem [shape: f32[16,1], index: 5, kind: input, shape index: {}]
  %s6 = inlined_call_operand.vmem [shape: f32[16,16], index: 6, kind: input, shape index: {}]
  %s7 = inlined_call_operand.vmem [shape: f32[16,16], index: 7, kind: input, shape index: {}]
  %s8 = inlined_call_operand.vmem [shape: f32[1,16], index: 8, kind: input, shape index: {}]
  %s9 = inlined_call_operand.vmem [shape: f32[1,16], index: 9, kind: input, shape index: {}]
  %s10 = inlined_call_operand.vmem [shape: f32[16,16], index: 10, kind: input, shape index: {}]
  %s11 = inlined_call_operand.vmem [shape: f32[1,16], index: 11, kind: input, shape index: {}]
  %s12 = inlined_call_operand.vmem [shape: f32[16,8], index: 12, kind: input, shape index: {}]
  %s13 = inlined_call_operand.hbm [shape: f32[2,8,8], index: 13, kind: output, shape index: {}]
  %s14 = sld [smem:[#allocation0]]
  $region97: #{tpu_custom_call.1} parent=0
    _
  %s16 = ssub.s32 1, %s14
  %s17 = scalar_select 0, %s16, %s14
  $region1: #{tpu_custom_call.1} parent=0
    #allocation6 [shape = 'u8[4096]{0}', space=vmem, size = 0x1000, scoped, tag = 'input window, operand 1, single buffered']
    #allocation7 [shape = 's32[2]{0}', space=sflag, size = 0x8, scoped, tag = 'scoped memory for tpu_custom_call.1']
    #allocation8 [shape = 's32[2]{0}', space=sflag, size = 0x8, scoped, tag = 'scoped memory for tpu_custom_call.1']
    #allocation9 [shape = 'u8[4096]{0}', space=vmem, size = 0x1000, scoped, tag = 'input window, operand 2, single buffered']
    #allocation10 [shape = 's32[1]{0}', space=sflag, size = 0x4, scoped, tag = 'scoped memory for tpu_custom_call.1']
    #allocation11 [shape = 'u8[2048]{0}', space=vmem, size = 0x800, scoped, tag = 'input window, operand 3, single buffered']
    #allocation12 [shape = 'u8[8192]{0}', space=vmem, size = 0x2000, scoped, tag = 'output window, operand 0']
    %18 = vsyncpa [#allocation7], 0
    %19 = vsyncpa [#allocation10], 0
    %20 = vsyncpa [#allocation8], 0
    %s21 = scalar_lea.sflag [#allocation8], 1
    %22 = vsyncpa %s21, 0
    loop: start=0, step=1, limit=4
    $region2: #{tpu_custom_call.1} parent=1 // loop_pre_header
      _
    $region3: #{tpu_custom_call.1} parent=1 // loop_header
      %s24 = sphi 0, %s28
      %p25 = scmp.ge.s32.totalorder %s24, 4
      %s34 = sphi 0, %s36
      %s37 = sphi 0, %s34
      %s38 = sphi 0, %s37
      %s54 = sphi 0, %s38
      %s58 = sphi 0, %s58
      %s60 = sphi 0, %s58
      %s61 = sphi 0, %s60
      %s75 = sphi 0, %s61
      %s79 = sphi 0, %s79
      %s81 = sphi 0, %s79
      %s82 = sphi 0, %s81
      %s96 = sphi 0, %s82
      %s100 = sphi 0, %s100
      %s102 = sphi 0, %s100
      %s103 = sphi 0, %s102
      %s117 = sphi 0, %s103
      %s121 = sphi 0, %s121
      %s123 = sphi 0, %s121
      %s124 = sphi 0, %s123
      %s138 = sphi 0, %s124
      %s142 = sphi 0, %s142
      %s144 = sphi 0, %s142
      %s145 = sphi 0, %s144
      %s159 = sphi 0, %s145
      %s163 = sphi 0, %s163
      %s165 = sphi 0, %s163
      %s166 = sphi 0, %s165
      %s180 = sphi 0, %s166
      %s184 = sphi 0, %s184
      %s186 = sphi 0, %s184
      %s187 = sphi 0, %s186
      %s201 = sphi 0, %s187
      %s205 = sphi 0, %s205
      %s207 = sphi 0, %s205
      %s208 = sphi 0, %s207
      %s222 = sphi 0, %s208
      %s226 = sphi 0, %s226
      %s228 = sphi 0, %s226
      %s229 = sphi 0, %s228
      %s243 = sphi 0, %s229
      %s247 = sphi 0, %s247
      %s249 = sphi 0, %s247
      %s250 = sphi 0, %s249
      %s264 = sphi 0, %s250
      %s268 = sphi 0, %s268
      %s270 = sphi 0, %s268
      %s271 = sphi 0, %s270
      %s285 = sphi 0, %s271
      %s289 = sphi 0, %s289
      %s291 = sphi 0, %s289
      %s292 = sphi 0, %s291
      %s306 = sphi 0, %s292
      %s312 = sphi 0, %s314
      %s315 = sphi 0, %s312
      %s316 = sphi 0, %s315
      %s332 = sphi 0, %s316
    $region4: #{tpu_custom_call.1} parent=1 // loop_header_branch
      %27 = sbr.rel (%p25) target = $region8
    $region5: #{tpu_custom_call.1} parent=1 // loop_body
      %s29 = ssub.s32 %s24, 1
      %s30 = ssub.s32 %s24, 2
      %s31 = sadd.s32 %s24, 1
      %s32 = ssub.s32 %s24, %s31
      %p33 = scmp.eq.s32.totalorder %s32, 0
      %s35 = sadd.s32 %s34, 1
      %s36 = scalar_select %p33, %s34, %s35
      %p39 = pneg %p33
      %p40 = scmp.eq.s32.totalorder %s24, 1
      %p41 = por %p39, %p40
      %p42 = scmp.ne.s32.totalorder %s34, %s37
      %p43 = scmp.eq.s32.totalorder %s24, 0
      %p44 = por %p42, %p43
      %p45 = scmp.ne.s32.totalorder %s34, %s37
      %p46 = scmp.eq.s32.totalorder %s29, 1
      %p47 = por %p45, %p46
      %p48 = scmp.ne.s32.totalorder %s37, %s38
      %p49 = scmp.eq.s32.totalorder %s29, 0
      %p50 = por %p48, %p49
      %p51 = scmp.ne.s32.totalorder %s37, %s38
      %p52 = scmp.eq.s32.totalorder %s30, 1
      %p53 = por %p51, %p52
      %p55 = scmp.ne.s32.totalorder %s38, %s54
      %p56 = scmp.eq.s32.totalorder %s30, 0
      %p57 = por %p55, %p56
      %s59 = sadd.s32 %s58, 1
      %p62 = scmp.eq.s32.totalorder %s24, 1
      %p63 = scmp.ne.s32.totalorder %s58, %s60
      %p64 = scmp.eq.s32.totalorder %s24, 0
      %p65 = por %p63, %p64
      %p66 = scmp.ne.s32.totalorder %s58, %s60
      %p67 = scmp.eq.s32.totalorder %s29, 1
      %p68 = por %p66, %p67
      %p69 = scmp.ne.s32.totalorder %s60, %s61
      %p70 = scmp.eq.s32.totalorder %s29, 0
      %p71 = por %p69, %p70
      %p72 = scmp.ne.s32.totalorder %s60, %s61
      %p73 = scmp.eq.s32.totalorder %s30, 1
      %p74 = por %p72, %p73
      %p76 = scmp.ne.s32.totalorder %s61, %s75
      %p77 = scmp.eq.s32.totalorder %s30, 0
      %p78 = por %p76, %p77
      %s80 = sadd.s32 %s79, 1
      %p83 = scmp.eq.s32.totalorder %s24, 1
      %p84 = scmp.ne.s32.totalorder %s79, %s81
      %p85 = scmp.eq.s32.totalorder %s24, 0
      %p86 = por %p84, %p85
      %p87 = scmp.ne.s32.totalorder %s79, %s81
      %p88 = scmp.eq.s32.totalorder %s29, 1
      %p89 = por %p87, %p88
      %p90 = scmp.ne.s32.totalorder %s81, %s82
      %p91 = scmp.eq.s32.totalorder %s29, 0
      %p92 = por %p90, %p91
      %p93 = scmp.ne.s32.totalorder %s81, %s82
      %p94 = scmp.eq.s32.totalorder %s30, 1
      %p95 = por %p93, %p94
      %p97 = scmp.ne.s32.totalorder %s82, %s96
      %p98 = scmp.eq.s32.totalorder %s30, 0
      %p99 = por %p97, %p98
      %s101 = sadd.s32 %s100, 1
      %p104 = scmp.eq.s32.totalorder %s24, 1
      %p105 = scmp.ne.s32.totalorder %s100, %s102
      %p106 = scmp.eq.s32.totalorder %s24, 0
      %p107 = por %p105, %p106
      %p108 = scmp.ne.s32.totalorder %s100, %s102
      %p109 = scmp.eq.s32.totalorder %s29, 1
      %p110 = por %p108, %p109
      %p111 = scmp.ne.s32.totalorder %s102, %s103
      %p112 = scmp.eq.s32.totalorder %s29, 0
      %p113 = por %p111, %p112
      %p114 = scmp.ne.s32.totalorder %s102, %s103
      %p115 = scmp.eq.s32.totalorder %s30, 1
      %p116 = por %p114, %p115
      %p118 = scmp.ne.s32.totalorder %s103, %s117
      %p119 = scmp.eq.s32.totalorder %s30, 0
      %p120 = por %p118, %p119
      %s122 = sadd.s32 %s121, 1
      %p125 = scmp.eq.s32.totalorder %s24, 1
      %p126 = scmp.ne.s32.totalorder %s121, %s123
      %p127 = scmp.eq.s32.totalorder %s24, 0
      %p128 = por %p126, %p127
      %p129 = scmp.ne.s32.totalorder %s121, %s123
      %p130 = scmp.eq.s32.totalorder %s29, 1
      %p131 = por %p129, %p130
      %p132 = scmp.ne.s32.totalorder %s123, %s124
      %p133 = scmp.eq.s32.totalorder %s29, 0
      %p134 = por %p132, %p133
      %p135 = scmp.ne.s32.totalorder %s123, %s124
      %p136 = scmp.eq.s32.totalorder %s30, 1
      %p137 = por %p135, %p136
      %p139 = scmp.ne.s32.totalorder %s124, %s138
      %p140 = scmp.eq.s32.totalorder %s30, 0
      %p141 = por %p139, %p140
      %s143 = sadd.s32 %s142, 1
      %p146 = scmp.eq.s32.totalorder %s24, 1
      %p147 = scmp.ne.s32.totalorder %s142, %s144
      %p148 = scmp.eq.s32.totalorder %s24, 0
      %p149 = por %p147, %p148
      %p150 = scmp.ne.s32.totalorder %s142, %s144
      %p151 = scmp.eq.s32.totalorder %s29, 1
      %p152 = por %p150, %p151
      %p153 = scmp.ne.s32.totalorder %s144, %s145
      %p154 = scmp.eq.s32.totalorder %s29, 0
      %p155 = por %p153, %p154
      %p156 = scmp.ne.s32.totalorder %s144, %s145
      %p157 = scmp.eq.s32.totalorder %s30, 1
      %p158 = por %p156, %p157
      %p160 = scmp.ne.s32.totalorder %s145, %s159
      %p161 = scmp.eq.s32.totalorder %s30, 0
      %p162 = por %p160, %p161
      %s164 = sadd.s32 %s163, 1
      %p167 = scmp.eq.s32.totalorder %s24, 1
      %p168 = scmp.ne.s32.totalorder %s163, %s165
      %p169 = scmp.eq.s32.totalorder %s24, 0
      %p170 = por %p168, %p169
      %p171 = scmp.ne.s32.totalorder %s163, %s165
      %p172 = scmp.eq.s32.totalorder %s29, 1
      %p173 = por %p171, %p172
      %p174 = scmp.ne.s32.totalorder %s165, %s166
      %p175 = scmp.eq.s32.totalorder %s29, 0
      %p176 = por %p174, %p175
      %p177 = scmp.ne.s32.totalorder %s165, %s166
      %p178 = scmp.eq.s32.totalorder %s30, 1
      %p179 = por %p177, %p178
      %p181 = scmp.ne.s32.totalorder %s166, %s180
      %p182 = scmp.eq.s32.totalorder %s30, 0
      %p183 = por %p181, %p182
      %s185 = sadd.s32 %s184, 1
      %p188 = scmp.eq.s32.totalorder %s24, 1
      %p189 = scmp.ne.s32.totalorder %s184, %s186
      %p190 = scmp.eq.s32.totalorder %s24, 0
      %p191 = por %p189, %p190
      %p192 = scmp.ne.s32.totalorder %s184, %s186
      %p193 = scmp.eq.s32.totalorder %s29, 1
      %p194 = por %p192, %p193
      %p195 = scmp.ne.s32.totalorder %s186, %s187
      %p196 = scmp.eq.s32.totalorder %s29, 0
      %p197 = por %p195, %p196
      %p198 = scmp.ne.s32.totalorder %s186, %s187
      %p199 = scmp.eq.s32.totalorder %s30, 1
      %p200 = por %p198, %p199
      %p202 = scmp.ne.s32.totalorder %s187, %s201
      %p203 = scmp.eq.s32.totalorder %s30, 0
      %p204 = por %p202, %p203
      %s206 = sadd.s32 %s205, 1
      %p209 = scmp.eq.s32.totalorder %s24, 1
      %p210 = scmp.ne.s32.totalorder %s205, %s207
      %p211 = scmp.eq.s32.totalorder %s24, 0
      %p212 = por %p210, %p211
      %p213 = scmp.ne.s32.totalorder %s205, %s207
      %p214 = scmp.eq.s32.totalorder %s29, 1
      %p215 = por %p213, %p214
      %p216 = scmp.ne.s32.totalorder %s207, %s208
      %p217 = scmp.eq.s32.totalorder %s29, 0
      %p218 = por %p216, %p217
      %p219 = scmp.ne.s32.totalorder %s207, %s208
      %p220 = scmp.eq.s32.totalorder %s30, 1
      %p221 = por %p219, %p220
      %p223 = scmp.ne.s32.totalorder %s208, %s222
      %p224 = scmp.eq.s32.totalorder %s30, 0
      %p225 = por %p223, %p224
      %s227 = sadd.s32 %s226, 1
      %p230 = scmp.eq.s32.totalorder %s24, 1
      %p231 = scmp.ne.s32.totalorder %s226, %s228
      %p232 = scmp.eq.s32.totalorder %s24, 0
      %p233 = por %p231, %p232
      %p234 = scmp.ne.s32.totalorder %s226, %s228
      %p235 = scmp.eq.s32.totalorder %s29, 1
      %p236 = por %p234, %p235
      %p237 = scmp.ne.s32.totalorder %s228, %s229
      %p238 = scmp.eq.s32.totalorder %s29, 0
      %p239 = por %p237, %p238
      %p240 = scmp.ne.s32.totalorder %s228, %s229
      %p241 = scmp.eq.s32.totalorder %s30, 1
      %p242 = por %p240, %p241
      %p244 = scmp.ne.s32.totalorder %s229, %s243
      %p245 = scmp.eq.s32.totalorder %s30, 0
      %p246 = por %p244, %p245
      %s248 = sadd.s32 %s247, 1
      %p251 = scmp.eq.s32.totalorder %s24, 1
      %p252 = scmp.ne.s32.totalorder %s247, %s249
      %p253 = scmp.eq.s32.totalorder %s24, 0
      %p254 = por %p252, %p253
      %p255 = scmp.ne.s32.totalorder %s247, %s249
      %p256 = scmp.eq.s32.totalorder %s29, 1
      %p257 = por %p255, %p256
      %p258 = scmp.ne.s32.totalorder %s249, %s250
      %p259 = scmp.eq.s32.totalorder %s29, 0
      %p260 = por %p258, %p259
      %p261 = scmp.ne.s32.totalorder %s249, %s250
      %p262 = scmp.eq.s32.totalorder %s30, 1
      %p263 = por %p261, %p262
      %p265 = scmp.ne.s32.totalorder %s250, %s264
      %p266 = scmp.eq.s32.totalorder %s30, 0
      %p267 = por %p265, %p266
      %s269 = sadd.s32 %s268, 1
      %p272 = scmp.eq.s32.totalorder %s24, 1
      %p273 = scmp.ne.s32.totalorder %s268, %s270
      %p274 = scmp.eq.s32.totalorder %s24, 0
      %p275 = por %p273, %p274
      %p276 = scmp.ne.s32.totalorder %s268, %s270
      %p277 = scmp.eq.s32.totalorder %s29, 1
      %p278 = por %p276, %p277
      %p279 = scmp.ne.s32.totalorder %s270, %s271
      %p280 = scmp.eq.s32.totalorder %s29, 0
      %p281 = por %p279, %p280
      %p282 = scmp.ne.s32.totalorder %s270, %s271
      %p283 = scmp.eq.s32.totalorder %s30, 1
      %p284 = por %p282, %p283
      %p286 = scmp.ne.s32.totalorder %s271, %s285
      %p287 = scmp.eq.s32.totalorder %s30, 0
      %p288 = por %p286, %p287
      %s290 = sadd.s32 %s289, 1
      %p293 = scmp.eq.s32.totalorder %s24, 1
      %p294 = scmp.ne.s32.totalorder %s289, %s291
      %p295 = scmp.eq.s32.totalorder %s24, 0
      %p296 = por %p294, %p295
      %p297 = scmp.ne.s32.totalorder %s289, %s291
      %p298 = scmp.eq.s32.totalorder %s29, 1
      %p299 = por %p297, %p298
      %p300 = scmp.ne.s32.totalorder %s291, %s292
      %p301 = scmp.eq.s32.totalorder %s29, 0
      %p302 = por %p300, %p301
      %p303 = scmp.ne.s32.totalorder %s291, %s292
      %p304 = scmp.eq.s32.totalorder %s30, 1
      %p305 = por %p303, %p304
      %p307 = scmp.ne.s32.totalorder %s292, %s306
      %p308 = scmp.eq.s32.totalorder %s30, 0
      %p309 = por %p307, %p308
      %s310 = ssub.s32 %s24, %s31
      %p311 = scmp.eq.s32.totalorder %s310, 0
      %s313 = sadd.s32 %s312, 1
      %s314 = scalar_select %p311, %s312, %s313
      %p317 = pneg %p311
      %p318 = scmp.eq.s32.totalorder %s24, 1
      %p319 = por %p317, %p318
      %p320 = scmp.ne.s32.totalorder %s312, %s315
      %p321 = scmp.eq.s32.totalorder %s24, 0
      %p322 = por %p320, %p321
      %p323 = scmp.ne.s32.totalorder %s312, %s315
      %p324 = scmp.eq.s32.totalorder %s29, 1
      %p325 = por %p323, %p324
      %p326 = scmp.ne.s32.totalorder %s315, %s316
      %p327 = scmp.eq.s32.totalorder %s29, 0
      %p328 = por %p326, %p327
      %p329 = scmp.ne.s32.totalorder %s315, %s316
      %p330 = scmp.eq.s32.totalorder %s30, 1
      %p331 = por %p329, %p330
      %p333 = scmp.ne.s32.totalorder %s316, %s332
      %p334 = scmp.eq.s32.totalorder %s30, 0
      %p335 = por %p333, %p334
      %p336 = scmp.le.s32.totalorder 1, %s24
      %p337 = scmp.lt.s32.totalorder %s24, 3
      %p338 = pnand %p336, %p337
      %p339 = pneg %p338
      // Predicated region
      $region9: #{tpu_custom_call.1} parent=5 // pred_check
        _
      $region10: #{tpu_custom_call.1} parent=5 // pred_check_branch
        %341 = sbr.rel (%p338) target = $region12
      $region11: #{tpu_custom_call.1} parent=5 // pred_region
        %s342 = ssub.s32 %s24, 1
        // Predicated region
        $region13: #{tpu_custom_call.1} parent=11 // pred_check
          %p343 = pneg %p71
        $region14: #{tpu_custom_call.1} parent=11 // pred_check_branch
          %345 = sbr.rel (%p343) target = $region16
        $region15: #{tpu_custom_call.1} parent=11 // pred_region
          %s347 = ssub.s32 128, 128
          %348 = vsyncadd [#allocation7], %s347
          %s350 = sshll.u32 [#allocation6], 4
          %s351 = int_to_ptr.vmem [resolvable:$true] %s350
          %353 = dma.hbm_to_vmem [thread:$0]  %s1, 128, %s351, [#allocation7]
        $region16: #{tpu_custom_call.1} parent=11 // pred_fallthru
          _
        // Predicated region
        $region17: #{tpu_custom_call.1} parent=11 // pred_check
          %p354 = pneg %p92
        $region18: #{tpu_custom_call.1} parent=11 // pred_check_branch
          %356 = sbr.rel (%p354) target = $region20
        $region19: #{tpu_custom_call.1} parent=11 // pred_region
          %s358 = ssub.s32 128, 128
          %359 = vsyncadd [#allocation10], %s358
          %s361 = sshll.u32 [#allocation9], 4
          %s362 = int_to_ptr.vmem [resolvable:$true] %s361
          %364 = dma.hbm_to_vmem [thread:$0]  %s2, 128, %s362, [#allocation10]
        $region20: #{tpu_custom_call.1} parent=11 // pred_fallthru
          _
        // Predicated region
        $region21: #{tpu_custom_call.1} parent=11 // pred_check
          %p365 = pneg %p113
        $region22: #{tpu_custom_call.1} parent=11 // pred_check_branch
          %367 = sbr.rel (%p365) target = $region24
        $region23: #{tpu_custom_call.1} parent=11 // pred_region
          %s369 = ssub.s32 64, 64
          %370 = vsyncadd [#allocation10], %s369
          %s372 = sshll.u32 [#allocation11], 4
          %s373 = int_to_ptr.vmem [resolvable:$true] %s372
          %375 = dma.hbm_to_vmem [thread:$0]  %s3, 64, %s373, [#allocation10]
        $region24: #{tpu_custom_call.1} parent=11 // pred_fallthru
          _
        // Predicated region
        $region25: #{tpu_custom_call.1} parent=11 // pred_check
          %p376 = pneg %p134
        $region26: #{tpu_custom_call.1} parent=11 // pred_check_branch
          %378 = sbr.rel (%p376) target = $region28
        $region27: #{tpu_custom_call.1} parent=11 // pred_region
          _
        $region28: #{tpu_custom_call.1} parent=11 // pred_fallthru
          _
        // Predicated region
        $region29: #{tpu_custom_call.1} parent=11 // pred_check
          %p379 = pneg %p155
        $region30: #{tpu_custom_call.1} parent=11 // pred_check_branch
          %381 = sbr.rel (%p379) target = $region32
        $region31: #{tpu_custom_call.1} parent=11 // pred_region
          _
        $region32: #{tpu_custom_call.1} parent=11 // pred_fallthru
          _
        // Predicated region
        $region33: #{tpu_custom_call.1} parent=11 // pred_check
          %p382 = pneg %p176
        $region34: #{tpu_custom_call.1} parent=11 // pred_check_branch
          %384 = sbr.rel (%p382) target = $region36
        $region35: #{tpu_custom_call.1} parent=11 // pred_region
          _
        $region36: #{tpu_custom_call.1} parent=11 // pred_fallthru
          _
        // Predicated region
        $region37: #{tpu_custom_call.1} parent=11 // pred_check
          %p385 = pneg %p197
        $region38: #{tpu_custom_call.1} parent=11 // pred_check_branch
          %387 = sbr.rel (%p385) target = $region40
        $region39: #{tpu_custom_call.1} parent=11 // pred_region
          _
        $region40: #{tpu_custom_call.1} parent=11 // pred_fallthru
          _
        // Predicated region
        $region41: #{tpu_custom_call.1} parent=11 // pred_check
          %p388 = pneg %p218
        $region42: #{tpu_custom_call.1} parent=11 // pred_check_branch
          %390 = sbr.rel (%p388) target = $region44
        $region43: #{tpu_custom_call.1} parent=11 // pred_region
          _
        $region44: #{tpu_custom_call.1} parent=11 // pred_fallthru
          _
        // Predicated region
        $region45: #{tpu_custom_call.1} parent=11 // pred_check
          %p391 = pneg %p239
        $region46: #{tpu_custom_call.1} parent=11 // pred_check_branch
          %393 = sbr.rel (%p391) target = $region48
        $region47: #{tpu_custom_call.1} parent=11 // pred_region
          _
        $region48: #{tpu_custom_call.1} parent=11 // pred_fallthru
          _
        // Predicated region
        $region49: #{tpu_custom_call.1} parent=11 // pred_check
          %p394 = pneg %p260
        $region50: #{tpu_custom_call.1} parent=11 // pred_check_branch
          %396 = sbr.rel (%p394) target = $region52
        $region51: #{tpu_custom_call.1} parent=11 // pred_region
          _
        $region52: #{tpu_custom_call.1} parent=11 // pred_fallthru
          _
        // Predicated region
        $region53: #{tpu_custom_call.1} parent=11 // pred_check
          %p397 = pneg %p281
        $region54: #{tpu_custom_call.1} parent=11 // pred_check_branch
          %399 = sbr.rel (%p397) target = $region56
        $region55: #{tpu_custom_call.1} parent=11 // pred_region
          _
        $region56: #{tpu_custom_call.1} parent=11 // pred_fallthru
          _
        // Predicated region
        $region57: #{tpu_custom_call.1} parent=11 // pred_check
          %p400 = pneg %p302
        $region58: #{tpu_custom_call.1} parent=11 // pred_check_branch
          %402 = sbr.rel (%p400) target = $region60
        $region59: #{tpu_custom_call.1} parent=11 // pred_region
          _
        $region60: #{tpu_custom_call.1} parent=11 // pred_fallthru
          _
      $region12: #{tpu_custom_call.1} parent=5 // pred_fallthru
        _
      %p403 = scmp.lt.s32.totalorder %s24, 2
      // Predicated region
      $region61: #{tpu_custom_call.1} parent=5 // pred_check
        %p404 = pneg %p403
      $region62: #{tpu_custom_call.1} parent=5 // pred_check_branch
        %406 = sbr.rel (%p404) target = $region64
      $region63: #{tpu_custom_call.1} parent=5 // pred_region
        // Predicated region
        $region65: #{tpu_custom_call.1} parent=63 // pred_check
          %p407 = pneg %p44
        $region66: #{tpu_custom_call.1} parent=63 // pred_check_branch
          %409 = sbr.rel (%p407) target = $region68
        $region67: #{tpu_custom_call.1} parent=63 // pred_region
          %p410 = scmp.lt.s32.totalorder %s24, 1
          %s411 = scalar_select %p410, %s24, 1
          %s412 = smul.addr %s411, 8
          %s413 = scalar_lea.vmem %s0, %s412
        $region68: #{tpu_custom_call.1} parent=63 // pred_fallthru
          _
      $region64: #{tpu_custom_call.1} parent=5 // pred_fallthru
        _
      %p414 = scmp.le.s32.totalorder 1, %s24
      %p415 = scmp.lt.s32.totalorder %s24, 3
      %p416 = pnand %p414, %p415
      %p417 = pneg %p416
      // Predicated region
      $region69: #{tpu_custom_call.1} parent=5 // pred_check
        _
      $region70: #{tpu_custom_call.1} parent=5 // pred_check_branch
        %419 = sbr.rel (%p416) target = $region72
      $region71: #{tpu_custom_call.1} parent=5 // pred_region
        %s420 = ssub.s32 %s24, 1
        // Predicated region
        $region73: #{tpu_custom_call.1} parent=71 // pred_check
          %p421 = pneg %p71
        $region74: #{tpu_custom_call.1} parent=71 // pred_check_branch
          %423 = sbr.rel (%p421) target = $region76
        $region75: #{tpu_custom_call.1} parent=71 // pred_region
          %424 = dma.done [#allocation7], 128
        $region76: #{tpu_custom_call.1} parent=71 // pred_fallthru
          _
        // Predicated region
        $region77: #{tpu_custom_call.1} parent=71 // pred_check
          %p425 = pneg %p92
        $region78: #{tpu_custom_call.1} parent=71 // pred_check_branch
          %427 = sbr.rel (%p425) target = $region80
        $region79: #{tpu_custom_call.1} parent=71 // pred_region
          %428 = dma.done [#allocation10], 128
        $region80: #{tpu_custom_call.1} parent=71 // pred_fallthru
          _
        // Predicated region
        $region81: #{tpu_custom_call.1} parent=71 // pred_check
          %p429 = pneg %p113
        $region82: #{tpu_custom_call.1} parent=71 // pred_check_branch
          %431 = sbr.rel (%p429) target = $region84
        $region83: #{tpu_custom_call.1} parent=71 // pred_region
          %432 = dma.done [#allocation10], 64
        $region84: #{tpu_custom_call.1} parent=71 // pred_fallthru
          _
        %p433 = scmp.lt.s32.totalorder %s29, 1
        %s434 = scalar_select %p433, %s29, 1
        %s435 = smul.addr %s434, 8
        %s436 = scalar_lea.vmem %s0, %s435
        %p437 = pneg %p50
        %p438 = pneg %p47
        %p439 = pneg %p71
        %p440 = pneg %p68
        %p441 = pneg %p92
        %p442 = pneg %p89
        %p443 = pneg %p113
        %p444 = pneg %p110
        %p445 = pneg %p134
        %p446 = pneg %p131
        %p447 = pneg %p155
        %p448 = pneg %p152
        %p449 = pneg %p176
        %p450 = pneg %p173
        %p451 = pneg %p197
        %p452 = pneg %p194
        %p453 = pneg %p218
        %p454 = pneg %p215
        %p455 = pneg %p239
        %p456 = pneg %p236
        %p457 = pneg %p260
        %p458 = pneg %p257
        %p459 = pneg %p281
        %p460 = pneg %p278
        %p461 = pneg %p302
        %p462 = pneg %p299
        %p463 = pneg %p328
        %p464 = pneg %p325
        %s465 = sand.u32 %s315, 1
        %s466 = scalar_lea.sflag [#allocation8], %s465
        %s467 = sand.u32 %s315, 1
        %s468 = smul.addr %s467, 8
        %s469 = scalar_lea.vmem [#allocation12], %s468
        %p470 = scmp.lt.s32.totalorder %s29, 1
        %s471 = scalar_select %p470, %s29, 1
        %s472 = smul.addr %s471, 8
        %s473 = scalar_lea.vmem %s0, %s472
        %v474 = vld [vmem:[%s473] sm:$0xff]
        %v475 = vld [vmem:[#allocation6] sm:$0xff]
        %vm476 = vcmask 64512
        %v478 = vsel %vm476, %v474, 0
        %480 = vmatprep.subr.mxu0 0.0
        %481 = vmatpush1.msra.mxu0 %v475
        %482 = vmatprep.subr.mxu0 0.0
        %483 = vmatpush1.msra.mxu0 0.0
        %484 = vmatprep.subr.mxu0 0.0
        %485 = vmatpush1.msra.mxu0 0.0
        %486 = vmatprep.subr.mxu0 0.0
        %487 = vmatpush1.msra.mxu0 0.0
        %488 = vmatprep.subr.mxu0 0.0
        %489 = vmatpush1.msra.mxu0 0.0
        %490 = vmatprep.subr.mxu0 0.0
        %491 = vmatpush1.msra.mxu0 0.0
        %492 = vmatprep.subr.mxu0 0.0
        %493 = vmatpush1.msra.mxu0 0.0
        %494 = vmatprep.subr.mxu0 0.0
        %495 = vmatpush1.msra.mxu0 0.0
        %496 = vmatprep.subr.mxu0 0.0
        %497 = vmatpush1.msra.mxu0 0.0
        %498 = vmatprep.subr.mxu0 0.0
        %499 = vmatpush1.msra.mxu0 0.0
        %500 = vmatprep.subr.mxu0 0.0
        %501 = vmatpush1.msra.mxu0 0.0
        %502 = vmatprep.subr.mxu0 0.0
        %503 = vmatpush1.msra.mxu0 0.0
        %504 = vmatprep.subr.mxu0 0.0
        %505 = vmatpush1.msra.mxu0 0.0
        %506 = vmatprep.subr.mxu0 0.0
        %507 = vmatpush1.msra.mxu0 0.0
        %508 = vmatprep.subr.mxu0 0.0
        %509 = vmatpush1.msra.mxu0 0.0
        %510 = vmatprep.subr.mxu0 0.0
        %511 = vmatpush1.msra.mxu0 0.0
        %512 = vmatprep.subr.mxu0 0.0
        %513 = vmatpush1.msra.mxu0 0.0
        %514 = vmatprep.subr.mxu0 0.0
        %515 = vmatpush1.msra.mxu0 0.0
        %516 = vmatprep.subr.mxu0 0.0
        %517 = vmatpush1.msra.mxu0 0.0
        %518 = vmatprep.subr.mxu0 0.0
        %519 = vmatpush1.msra.mxu0 0.0
        %520 = vmatprep.subr.mxu0 0.0
        %521 = vmatpush1.msra.mxu0 0.0
        %522 = vmatprep.subr.mxu0 0.0
        %523 = vmatpush1.msra.mxu0 0.0
        %524 = vmatprep.subr.mxu0 0.0
        %525 = vmatpush1.msra.mxu0 0.0
        %526 = vmatprep.subr.mxu0 0.0
        %527 = vmatpush1.msra.mxu0 0.0
        %528 = vmatprep.subr.mxu0 0.0
        %529 = vmatpush1.msra.mxu0 0.0
        %530 = vmatprep.subr.mxu0 0.0
        %531 = vmatpush1.msra.mxu0 0.0
        %532 = vmatprep.subr.mxu0 0.0
        %533 = vmatpush1.msra.mxu0 0.0
        %534 = vmatprep.subr.mxu0 0.0
        %535 = vmatpush1.msra.mxu0 0.0
        %536 = vmatprep.subr.mxu0 0.0
        %537 = vmatpush1.msra.mxu0 0.0
        %538 = vmatprep.subr.mxu0 0.0
        %539 = vmatpush1.msra.mxu0 0.0
        %540 = vmatprep.subr.mxu0 0.0
        %541 = vmatpush1.msra.mxu0 0.0
        %542 = vmatprep.subr.mxu0 0.0
        %543 = vmatpush1.msra.mxu0 0.0
        %544 = vmatprep.mubr.f32.mxu0 0.0
        %545 = vmatmul.mubr.f32.gmra.mrb[0].mxu0 %v478
        %v546 = vpop.f32.mrb[0].mxu0
        %v547 = vadd.f32 0.0, %v546
        %v548 = vpop.f32.mrb[0].mxu0
        %549 = vdwg.mxu0
        %v550 = vld [vmem:[#allocation9] sm:$0xff]
        %551 = vmatprep.subr.mxu0 0.0
        %552 = vmatpush1.msra.mxu0 %v550
        %553 = vmatprep.subr.mxu0 0.0
        %554 = vmatpush1.msra.mxu0 0.0
        %555 = vmatprep.subr.mxu0 0.0
        %556 = vmatpush1.msra.mxu0 0.0
        %557 = vmatprep.subr.mxu0 0.0
        %558 = vmatpush1.msra.mxu0 0.0
        %559 = vmatprep.subr.mxu0 0.0
        %560 = vmatpush1.msra.mxu0 0.0
        %561 = vmatprep.subr.mxu0 0.0
        %562 = vmatpush1.msra.mxu0 0.0
        %563 = vmatprep.subr.mxu0 0.0
        %564 = vmatpush1.msra.mxu0 0.0
        %565 = vmatprep.subr.mxu0 0.0
        %566 = vmatpush1.msra.mxu0 0.0
        %567 = vmatprep.subr.mxu0 0.0
        %568 = vmatpush1.msra.mxu0 0.0
        %569 = vmatprep.subr.mxu0 0.0
        %570 = vmatpush1.msra.mxu0 0.0
        %571 = vmatprep.subr.mxu0 0.0
        %572 = vmatpush1.msra.mxu0 0.0
        %573 = vmatprep.subr.mxu0 0.0
        %574 = vmatpush1.msra.mxu0 0.0
        %575 = vmatprep.subr.mxu0 0.0
        %576 = vmatpush1.msra.mxu0 0.0
        %577 = vmatprep.subr.mxu0 0.0
        %578 = vmatpush1.msra.mxu0 0.0
        %579 = vmatprep.subr.mxu0 0.0
        %580 = vmatpush1.msra.mxu0 0.0
        %581 = vmatprep.subr.mxu0 0.0
        %582 = vmatpush1.msra.mxu0 0.0
        %583 = vmatprep.subr.mxu0 0.0
        %584 = vmatpush1.msra.mxu0 0.0
        %585 = vmatprep.subr.mxu0 0.0
        %586 = vmatpush1.msra.mxu0 0.0
        %587 = vmatprep.subr.mxu0 0.0
        %588 = vmatpush1.msra.mxu0 0.0
        %589 = vmatprep.subr.mxu0 0.0
        %590 = vmatpush1.msra.mxu0 0.0
        %591 = vmatprep.subr.mxu0 0.0
        %592 = vmatpush1.msra.mxu0 0.0
        %593 = vmatprep.subr.mxu0 0.0
        %594 = vmatpush1.msra.mxu0 0.0
        %595 = vmatprep.subr.mxu0 0.0
        %596 = vmatpush1.msra.mxu0 0.0
        %597 = vmatprep.subr.mxu0 0.0
        %598 = vmatpush1.msra.mxu0 0.0
        %599 = vmatprep.subr.mxu0 0.0
        %600 = vmatpush1.msra.mxu0 0.0
        %601 = vmatprep.subr.mxu0 0.0
        %602 = vmatpush1.msra.mxu0 0.0
        %603 = vmatprep.subr.mxu0 0.0
        %604 = vmatpush1.msra.mxu0 0.0
        %605 = vmatprep.subr.mxu0 0.0
        %606 = vmatpush1.msra.mxu0 0.0
        %607 = vmatprep.subr.mxu0 0.0
        %608 = vmatpush1.msra.mxu0 0.0
        %609 = vmatprep.subr.mxu0 0.0
        %610 = vmatpush1.msra.mxu0 0.0
        %611 = vmatprep.subr.mxu0 0.0
        %612 = vmatpush1.msra.mxu0 0.0
        %613 = vmatprep.subr.mxu0 0.0
        %614 = vmatpush1.msra.mxu0 0.0
        %615 = vmatprep.mubr.f32.mxu0 0.0
        %616 = vmatmul.mubr.f32.gmra.mrb[0].mxu0 %v478
        %v617 = vpop.f32.mrb[0].mxu0
        %v618 = vadd.f32 0.0, %v617
        %v619 = vpop.f32.mrb[0].mxu0
        %620 = vdwg.mxu0
        %v621 = vld [vmem:[#allocation11] sm:$0x1]
        %v623 = vrot.slane %v547, 5
        %vm625 = vcmask 1042432
        %v626 = vsel %vm625, 0.0, %v623
        %v627 = vlaneseq
        %v628 = vshrl.u32 %v627, 7
        %v629 = vsub.s32 0, %v628
        %v630 = vrot.slane %v621, %v629
        %v631 = vmul.f32 %v626, %v630
        %v632 = vadd.f32 %v631, 0.0
        %v633 = vld [vmem:[#allocation11 + $0x1] sm:$0x1]
        %v634 = vrot.slane %v547, 6
        %vm636 = vcmask 1041408
        %v637 = vsel %vm636, 0.0, %v634
        %v638 = vlaneseq
        %v639 = vshrl.u32 %v638, 7
        %v640 = vsub.s32 0, %v639
        %v641 = vrot.slane %v633, %v640
        %v642 = vmul.f32 %v637, %v641
        %v643 = vadd.f32 %v632, %v642
        %v644 = vld [vmem:[#allocation11 + $0x2] sm:$0x1]
        %v645 = vrot.slane %v547, 7
        %vm647 = vcmask 1040384
        %v648 = vsel %vm647, 0.0, %v645
        %v649 = vlaneseq
        %v650 = vshrl.u32 %v649, 7
        %v651 = vsub.s32 0, %v650
        %v652 = vrot.slane %v644, %v651
        %v653 = vmul.f32 %v648, %v652
        %v654 = vadd.f32 %v643, %v653
        %v655 = vld [vmem:[#allocation11 + $0x3] sm:$0x1]
        %v656 = vlaneseq
        %v657 = vshrl.u32 %v656, 7
        %v658 = vsub.s32 0, %v657
        %v659 = vrot.slane %v655, %v658
        %v660 = vmul.f32 %v547, %v659
        %v661 = vadd.f32 %v654, %v660
        %v662 = vld [vmem:[%s4] sm:$0x1]
        %v664 = vlaneseq
        %v665 = vshrl.u32 %v664, 7
        %v666 = vsub.s32 0, %v665
        %v667 = vrot.slane %v662, %v666
        %v669 = vadd.f32 %v661, %v667
        %v670 = vxor.u32 %v669, 2147483648
        %v671 = vmul.f32 %v670, 1.442695
        %v672 = vpow.pop %v671
        %v673 = vadd.f32 %v672, 1.0
        %v674 = vrcp.pop %v673
        %v675 = vmul.f32 1.0, %v674
        %v676 = vmul.f32 %v669, %v675
        %v677 = vld [vmem:[%s5] sm:$0xff]
        %v678 = vld [vmem:[%s5 + $0x8] sm:$0xff]
        %vm679 = vcmask 130048
        %v681 = vsel %vm679, %v676, 0
        %683 = vmatprep.subr.mxu0 0.0
        %684 = vmatpush1.msra.mxu0 %v677
        %685 = vmatprep.subr.mxu0 0.0
        %686 = vmatpush1.msra.mxu0 %v678
        %687 = vmatprep.subr.mxu0 0.0
        %688 = vmatpush1.msra.mxu0 0.0
        %689 = vmatprep.subr.mxu0 0.0
        %690 = vmatpush1.msra.mxu0 0.0
        %691 = vmatprep.subr.mxu0 0.0
        %692 = vmatpush1.msra.mxu0 0.0
        %693 = vmatprep.subr.mxu0 0.0
        %694 = vmatpush1.msra.mxu0 0.0
        %695 = vmatprep.subr.mxu0 0.0
        %696 = vmatpush1.msra.mxu0 0.0
        %697 = vmatprep.subr.mxu0 0.0
        %698 = vmatpush1.msra.mxu0 0.0
        %699 = vmatprep.subr.mxu0 0.0
        %700 = vmatpush1.msra.mxu0 0.0
        %701 = vmatprep.subr.mxu0 0.0
        %702 = vmatpush1.msra.mxu0 0.0
        %703 = vmatprep.subr.mxu0 0.0
        %704 = vmatpush1.msra.mxu0 0.0
        %705 = vmatprep.subr.mxu0 0.0
        %706 = vmatpush1.msra.mxu0 0.0
        %707 = vmatprep.subr.mxu0 0.0
        %708 = vmatpush1.msra.mxu0 0.0
        %709 = vmatprep.subr.mxu0 0.0
        %710 = vmatpush1.msra.mxu0 0.0
        %711 = vmatprep.subr.mxu0 0.0
        %712 = vmatpush1.msra.mxu0 0.0
        %713 = vmatprep.subr.mxu0 0.0
        %714 = vmatpush1.msra.mxu0 0.0
        %715 = vmatprep.subr.mxu0 0.0
        %716 = vmatpush1.msra.mxu0 0.0
        %717 = vmatprep.subr.mxu0 0.0
        %718 = vmatpush1.msra.mxu0 0.0
        %719 = vmatprep.subr.mxu0 0.0
        %720 = vmatpush1.msra.mxu0 0.0
        %721 = vmatprep.subr.mxu0 0.0
        %722 = vmatpush1.msra.mxu0 0.0
        %723 = vmatprep.subr.mxu0 0.0
        %724 = vmatpush1.msra.mxu0 0.0
        %725 = vmatprep.subr.mxu0 0.0
        %726 = vmatpush1.msra.mxu0 0.0
        %727 = vmatprep.subr.mxu0 0.0
        %728 = vmatpush1.msra.mxu0 0.0
        %729 = vmatprep.subr.mxu0 0.0
        %730 = vmatpush1.msra.mxu0 0.0
        %731 = vmatprep.subr.mxu0 0.0
        %732 = vmatpush1.msra.mxu0 0.0
        %733 = vmatprep.subr.mxu0 0.0
        %734 = vmatpush1.msra.mxu0 0.0
        %735 = vmatprep.subr.mxu0 0.0
        %736 = vmatpush1.msra.mxu0 0.0
        %737 = vmatprep.subr.mxu0 0.0
        %738 = vmatpush1.msra.mxu0 0.0
        %739 = vmatprep.subr.mxu0 0.0
        %740 = vmatpush1.msra.mxu0 0.0
        %741 = vmatprep.subr.mxu0 0.0
        %742 = vmatpush1.msra.mxu0 0.0
        %743 = vmatprep.subr.mxu0 0.0
        %744 = vmatpush1.msra.mxu0 0.0
        %745 = vmatprep.subr.mxu0 0.0
        %746 = vmatpush1.msra.mxu0 0.0
        %747 = vmatprep.mubr.f32.mxu0 0.0
        %748 = vmatmul.mubr.f32.gmra.mrb[0].mxu0 %v681
        %v749 = vpop.f32.mrb[0].mxu0
        %v750 = vadd.f32 0.0, %v749
        %v751 = vpop.f32.mrb[0].mxu0
        %752 = vdwg.mxu0
        %v753 = vld [vmem:[%s6] sm:$0xff]
        %v754 = vld [vmem:[%s6 + $0x8] sm:$0xff]
        %755 = vmatprep.subr.mxu0 0.0
        %756 = vmatpush1.msra.mxu0 %v753
        %757 = vmatprep.subr.mxu0 0.0
        %758 = vmatpush1.msra.mxu0 %v754
        %759 = vmatprep.subr.mxu0 0.0
        %760 = vmatpush1.msra.mxu0 0.0
        %761 = vmatprep.subr.mxu0 0.0
        %762 = vmatpush1.msra.mxu0 0.0
        %763 = vmatprep.subr.mxu0 0.0
        %764 = vmatpush1.msra.mxu0 0.0
        %765 = vmatprep.subr.mxu0 0.0
        %766 = vmatpush1.msra.mxu0 0.0
        %767 = vmatprep.subr.mxu0 0.0
        %768 = vmatpush1.msra.mxu0 0.0
        %769 = vmatprep.subr.mxu0 0.0
        %770 = vmatpush1.msra.mxu0 0.0
        %771 = vmatprep.subr.mxu0 0.0
        %772 = vmatpush1.msra.mxu0 0.0
        %773 = vmatprep.subr.mxu0 0.0
        %774 = vmatpush1.msra.mxu0 0.0
        %775 = vmatprep.subr.mxu0 0.0
        %776 = vmatpush1.msra.mxu0 0.0
        %777 = vmatprep.subr.mxu0 0.0
        %778 = vmatpush1.msra.mxu0 0.0
        %779 = vmatprep.subr.mxu0 0.0
        %780 = vmatpush1.msra.mxu0 0.0
        %781 = vmatprep.subr.mxu0 0.0
        %782 = vmatpush1.msra.mxu0 0.0
        %783 = vmatprep.subr.mxu0 0.0
        %784 = vmatpush1.msra.mxu0 0.0
        %785 = vmatprep.subr.mxu0 0.0
        %786 = vmatpush1.msra.mxu0 0.0
        %787 = vmatprep.subr.mxu0 0.0
        %788 = vmatpush1.msra.mxu0 0.0
        %789 = vmatprep.subr.mxu0 0.0
        %790 = vmatpush1.msra.mxu0 0.0
        %791 = vmatprep.subr.mxu0 0.0
        %792 = vmatpush1.msra.mxu0 0.0
        %793 = vmatprep.subr.mxu0 0.0
        %794 = vmatpush1.msra.mxu0 0.0
        %795 = vmatprep.subr.mxu0 0.0
        %796 = vmatpush1.msra.mxu0 0.0
        %797 = vmatprep.subr.mxu0 0.0
        %798 = vmatpush1.msra.mxu0 0.0
        %799 = vmatprep.subr.mxu0 0.0
        %800 = vmatpush1.msra.mxu0 0.0
        %801 = vmatprep.subr.mxu0 0.0
        %802 = vmatpush1.msra.mxu0 0.0
        %803 = vmatprep.subr.mxu0 0.0
        %804 = vmatpush1.msra.mxu0 0.0
        %805 = vmatprep.subr.mxu0 0.0
        %806 = vmatpush1.msra.mxu0 0.0
        %807 = vmatprep.subr.mxu0 0.0
        %808 = vmatpush1.msra.mxu0 0.0
        %809 = vmatprep.subr.mxu0 0.0
        %810 = vmatpush1.msra.mxu0 0.0
        %811 = vmatprep.subr.mxu0 0.0
        %812 = vmatpush1.msra.mxu0 0.0
        %813 = vmatprep.subr.mxu0 0.0
        %814 = vmatpush1.msra.mxu0 0.0
        %815 = vmatprep.subr.mxu0 0.0
        %816 = vmatpush1.msra.mxu0 0.0
        %817 = vmatprep.subr.mxu0 0.0
        %818 = vmatpush1.msra.mxu0 0.0
        %819 = vmatprep.mubr.f32.mxu0 0.0
        %820 = vmatmul.mubr.f32.gmra.mrb[0].mxu0 %v681
        %v821 = vpop.f32.mrb[0].mxu0
        %v822 = vadd.f32 0.0, %v821
        %v823 = vpop.f32.mrb[0].mxu0
        %824 = vdwg.mxu0
        %v825 = vld [vmem:[%s7] sm:$0xff]
        %v826 = vld [vmem:[%s7 + $0x8] sm:$0xff]
        %827 = vmatprep.subr.mxu0 0.0
        %828 = vmatpush1.msra.mxu0 %v825
        %829 = vmatprep.subr.mxu0 0.0
        %830 = vmatpush1.msra.mxu0 %v826
        %831 = vmatprep.subr.mxu0 0.0
        %832 = vmatpush1.msra.mxu0 0.0
        %833 = vmatprep.subr.mxu0 0.0
        %834 = vmatpush1.msra.mxu0 0.0
        %835 = vmatprep.subr.mxu0 0.0
        %836 = vmatpush1.msra.mxu0 0.0
        %837 = vmatprep.subr.mxu0 0.0
        %838 = vmatpush1.msra.mxu0 0.0
        %839 = vmatprep.subr.mxu0 0.0
        %840 = vmatpush1.msra.mxu0 0.0
        %841 = vmatprep.subr.mxu0 0.0
        %842 = vmatpush1.msra.mxu0 0.0
        %843 = vmatprep.subr.mxu0 0.0
        %844 = vmatpush1.msra.mxu0 0.0
        %845 = vmatprep.subr.mxu0 0.0
        %846 = vmatpush1.msra.mxu0 0.0
        %847 = vmatprep.subr.mxu0 0.0
        %848 = vmatpush1.msra.mxu0 0.0
        %849 = vmatprep.subr.mxu0 0.0
        %850 = vmatpush1.msra.mxu0 0.0
        %851 = vmatprep.subr.mxu0 0.0
        %852 = vmatpush1.msra.mxu0 0.0
        %853 = vmatprep.subr.mxu0 0.0
        %854 = vmatpush1.msra.mxu0 0.0
        %855 = vmatprep.subr.mxu0 0.0
        %856 = vmatpush1.msra.mxu0 0.0
        %857 = vmatprep.subr.mxu0 0.0
        %858 = vmatpush1.msra.mxu0 0.0
        %859 = vmatprep.subr.mxu0 0.0
        %860 = vmatpush1.msra.mxu0 0.0
        %861 = vmatprep.subr.mxu0 0.0
        %862 = vmatpush1.msra.mxu0 0.0
        %863 = vmatprep.subr.mxu0 0.0
        %864 = vmatpush1.msra.mxu0 0.0
        %865 = vmatprep.subr.mxu0 0.0
        %866 = vmatpush1.msra.mxu0 0.0
        %867 = vmatprep.subr.mxu0 0.0
        %868 = vmatpush1.msra.mxu0 0.0
        %869 = vmatprep.subr.mxu0 0.0
        %870 = vmatpush1.msra.mxu0 0.0
        %871 = vmatprep.subr.mxu0 0.0
        %872 = vmatpush1.msra.mxu0 0.0
        %873 = vmatprep.subr.mxu0 0.0
        %874 = vmatpush1.msra.mxu0 0.0
        %875 = vmatprep.subr.mxu0 0.0
        %876 = vmatpush1.msra.mxu0 0.0
        %877 = vmatprep.subr.mxu0 0.0
        %878 = vmatpush1.msra.mxu0 0.0
        %879 = vmatprep.subr.mxu0 0.0
        %880 = vmatpush1.msra.mxu0 0.0
        %881 = vmatprep.subr.mxu0 0.0
        %882 = vmatpush1.msra.mxu0 0.0
        %883 = vmatprep.subr.mxu0 0.0
        %884 = vmatpush1.msra.mxu0 0.0
        %885 = vmatprep.subr.mxu0 0.0
        %886 = vmatpush1.msra.mxu0 0.0
        %887 = vmatprep.subr.mxu0 0.0
        %888 = vmatpush1.msra.mxu0 0.0
        %889 = vmatprep.subr.mxu0 0.0
        %890 = vmatpush1.msra.mxu0 0.0
        %891 = vmatprep.mubr.f32.mxu0 0.0
        %892 = vmatmul.mubr.f32.gmra.mrb[0].mxu0 %v681
        %v893 = vpop.f32.mrb[0].mxu0
        %v894 = vadd.f32 0.0, %v893
        %v895 = vpop.f32.mrb[0].mxu0
        %896 = vdwg.mxu0
        %v897 = vld [vmem:[%s8] sm:$0x1]
        %v898 = vld [vmem:[%s9] sm:$0x1]
        %v900 = vlaneseq
        %v901 = vshrl.u32 %v900, 7
        %v902 = vsub.s32 0, %v901
        %v903 = vrot.slane %v898, %v902
        %vm905 = vcmask 7168
        %v907 = vsel %vm905, %v750, 0
        %v910 = vsel %vm647, %v897, 0
        %912 = vmatprep.subr.mxu0 0.0
        %913 = vmatpush1.msra.mxu0 %v910
        %914 = vmatprep.subr.mxu0 0.0
        %915 = vmatpush1.msra.mxu0 0.0
        %916 = vmatprep.subr.mxu0 0.0
        %917 = vmatpush1.msra.mxu0 0.0
        %918 = vmatprep.subr.mxu0 0.0
        %919 = vmatpush1.msra.mxu0 0.0
        %920 = vmatprep.subr.mxu0 0.0
        %921 = vmatpush1.msra.mxu0 0.0
        %922 = vmatprep.subr.mxu0 0.0
        %923 = vmatpush1.msra.mxu0 0.0
        %924 = vmatprep.subr.mxu0 0.0
        %925 = vmatpush1.msra.mxu0 0.0
        %926 = vmatprep.subr.mxu0 0.0
        %927 = vmatpush1.msra.mxu0 0.0
        %928 = vmatprep.subr.mxu0 0.0
        %929 = vmatpush1.msra.mxu0 0.0
        %930 = vmatprep.subr.mxu0 0.0
        %931 = vmatpush1.msra.mxu0 0.0
        %932 = vmatprep.subr.mxu0 0.0
        %933 = vmatpush1.msra.mxu0 0.0
        %934 = vmatprep.subr.mxu0 0.0
        %935 = vmatpush1.msra.mxu0 0.0
        %936 = vmatprep.subr.mxu0 0.0
        %937 = vmatpush1.msra.mxu0 0.0
        %938 = vmatprep.subr.mxu0 0.0
        %939 = vmatpush1.msra.mxu0 0.0
        %940 = vmatprep.subr.mxu0 0.0
        %941 = vmatpush1.msra.mxu0 0.0
        %942 = vmatprep.subr.mxu0 0.0
        %943 = vmatpush1.msra.mxu0 0.0
        %944 = vmatprep.subr.mxu0 0.0
        %945 = vmatpush1.msra.mxu0 0.0
        %946 = vmatprep.subr.mxu0 0.0
        %947 = vmatpush1.msra.mxu0 0.0
        %948 = vmatprep.subr.mxu0 0.0
        %949 = vmatpush1.msra.mxu0 0.0
        %950 = vmatprep.subr.mxu0 0.0
        %951 = vmatpush1.msra.mxu0 0.0
        %952 = vmatprep.subr.mxu0 0.0
        %953 = vmatpush1.msra.mxu0 0.0
        %954 = vmatprep.subr.mxu0 0.0
        %955 = vmatpush1.msra.mxu0 0.0
        %956 = vmatprep.subr.mxu0 0.0
        %957 = vmatpush1.msra.mxu0 0.0
        %958 = vmatprep.subr.mxu0 0.0
        %959 = vmatpush1.msra.mxu0 0.0
        %960 = vmatprep.subr.mxu0 0.0
        %961 = vmatpush1.msra.mxu0 0.0
        %962 = vmatprep.subr.mxu0 0.0
        %963 = vmatpush1.msra.mxu0 0.0
        %964 = vmatprep.subr.mxu0 0.0
        %965 = vmatpush1.msra.mxu0 0.0
        %966 = vmatprep.subr.mxu0 0.0
        %967 = vmatpush1.msra.mxu0 0.0
        %968 = vmatprep.subr.mxu0 0.0
        %969 = vmatpush1.msra.mxu0 0.0
        %970 = vmatprep.subr.mxu0 0.0
        %971 = vmatpush1.msra.mxu0 0.0
        %972 = vmatprep.subr.mxu0 0.0
        %973 = vmatpush1.msra.mxu0 0.0
        %974 = vmatprep.subr.mxu0 0.0
        %975 = vmatpush1.msra.mxu0 0.0
        %976 = vmatprep.mubr.f32.mxu0 0.0
        %977 = vmatmul.mubr.f32.gmra.mrb[0].mxu0 %v907
        %v978 = vpop.f32.mrb[0].mxu0
        %v979 = vadd.f32 %v903, %v978
        %v980 = vpop.f32.mrb[0].mxu0
        %981 = vdwg.mxu0
        %v982 = vmax.f32 %v979, 0.0
        %vm983 = vcmp.ne.f32.partialorder %v979, %v979
        %v984 = vadd.f32 %v979, 0.0
        %v985 = vand.u32 2147483647, %v979
        %v986 = vsub.f32 0.0, %v985
        %v987 = vmul.f32 %v986, 1.442695
        %v988 = vpow.pop %v987
        %v989 = vadd.f32 %v988, 1.0
        %v990 = vlog2.pop %v989
        %v991 = vmul.f32 %v990, 0.6931472
        %v992 = vmul.f32 -0.5, %v988
        %v993 = vadd.f32 %v992, 1.0
        %v994 = vmul.f32 %v993, %v988
        %v995 = vand.u32 2147483647, %v988
        %vm996 = vcmp.lt.f32.partialorder %v995, 0.0004427343
        %v997 = vsel %vm996, %v994, %v991
        %v998 = vadd.f32 %v982, %v997
        %v999 = vsel %vm983, %v984, %v998
        %v1000 = vmul.f32 %v999, %v676
        %v1001 = vld [vmem:[%s10] sm:$0xff]
        %v1002 = vld [vmem:[%s10 + $0x8] sm:$0xff]
        %1003 = vst.msk [vmem:[#allocation4] sm:$0xff] %vm679, %v894
        %v1005 = vcombine.high %v999, %v999
        %v1007 = vunpack.c.l.s4 1966171168
        %v1008 = vunpack.c.0.s8 %v1007
        %v1009 = vlaneseq
        %v1010 = vshrl.u32 %v1009, 7
        %v1011 = vsub.s32 %v1008, %v1010
        %v1012 = vrot.slane %v999, %v1011
        %v1014 = vunpack.c.l.s4 1966171168
        %v1015 = vunpack.c.0.s8 %v1014
        %v1016 = vlaneseq
        %v1017 = vshrl.u32 %v1016, 7
        %v1018 = vsub.s32 %v1015, %v1017
        %v1019 = vrot.slane %v1005, %v1018
        %v1020 = vcombine.high %v1012, %v1012
        %v1021 = vcombine.high %v1019, %v1019
        %v1023 = vunpack.c.l.s4 1966171168
        %v1024 = vunpack.c.0.s8 %v1023
        %v1025 = vlaneseq
        %v1026 = vshrl.u32 %v1025, 7
        %v1027 = vsub.s32 %v1024, %v1026
        %v1028 = vrot.slane %v1012, %v1027
        %v1030 = vunpack.c.l.s4 1966171168
        %v1031 = vunpack.c.0.s8 %v1030
        %v1032 = vlaneseq
        %v1033 = vshrl.u32 %v1032, 7
        %v1034 = vsub.s32 %v1031, %v1033
        %v1035 = vrot.slane %v1019, %v1034
        %v1037 = vunpack.c.l.s4 1966171168
        %v1038 = vunpack.c.0.s8 %v1037
        %v1039 = vlaneseq
        %v1040 = vshrl.u32 %v1039, 7
        %v1041 = vsub.s32 %v1038, %v1040
        %v1042 = vrot.slane %v1020, %v1041
        %v1044 = vunpack.c.l.s4 1966171168
        %v1045 = vunpack.c.0.s8 %v1044
        %v1046 = vlaneseq
        %v1047 = vshrl.u32 %v1046, 7
        %v1048 = vsub.s32 %v1045, %v1047
        %v1049 = vrot.slane %v1021, %v1048
        %v1050 = vcombine.high %v1028, %v1028
        %v1051 = vcombine.high %v1035, %v1035
        %v1052 = vcombine.high %v1042, %v1042
        %v1053 = vcombine.high %v1049, %v1049
        %v1054 = vlaneseq
        %v1055 = vshrl.u32 %v1054, 7
        %v1056 = vsub.s32 0, %v1055
        %v1057 = vrot.slane %v1028, %v1056
        %v1058 = vlaneseq
        %v1059 = vshrl.u32 %v1058, 7
        %v1060 = vsub.s32 0, %v1059
        %v1061 = vrot.slane %v1042, %v1060
        %v1062 = vlaneseq
        %v1063 = vshrl.u32 %v1062, 7
        %v1064 = vsub.s32 0, %v1063
        %v1065 = vrot.slane %v1050, %v1064
        %v1066 = vlaneseq
        %v1067 = vshrl.u32 %v1066, 7
        %v1068 = vsub.s32 0, %v1067
        %v1069 = vrot.slane %v1052, %v1068
        %v1070 = vlaneseq
        %v1071 = vshrl.u32 %v1070, 7
        %v1072 = vsub.s32 0, %v1071
        %v1073 = vrot.slane %v1035, %v1072
        %v1074 = vlaneseq
        %v1075 = vshrl.u32 %v1074, 7
        %v1076 = vsub.s32 0, %v1075
        %v1077 = vrot.slane %v1049, %v1076
        %v1078 = vlaneseq
        %v1079 = vshrl.u32 %v1078, 7
        %v1080 = vsub.s32 0, %v1079
        %v1081 = vrot.slane %v1051, %v1080
        %v1082 = vlaneseq
        %v1083 = vshrl.u32 %v1082, 7
        %v1084 = vsub.s32 0, %v1083
        %v1085 = vrot.slane %v1053, %v1084
        %v1094 = vmul.f32 %v1057, %v1001
        %v1095 = vmul.f32 %v1057, %v1002
        %v1096 = vmul.f32 %v1061, %v1001
        %v1097 = vmul.f32 %v1061, %v1002
        %v1098 = vmul.f32 %v1065, %v1001
        %v1099 = vmul.f32 %v1065, %v1002
        %v1100 = vmul.f32 %v1069, %v1001
        %v1101 = vmul.f32 %v1069, %v1002
        %v1102 = vmul.f32 %v1073, %v1001
        %v1103 = vmul.f32 %v1073, %v1002
        %v1104 = vmul.f32 %v1077, %v1001
        %v1105 = vmul.f32 %v1077, %v1002
        %v1106 = vmul.f32 %v1081, %v1001
        %v1107 = vmul.f32 %v1081, %v1002
        %v1108 = vmul.f32 %v1085, %v1001
        %v1109 = vmul.f32 %v1085, %v1002
        %v1110 = vmul.f32 %v1094, 1.442695
        %v1111 = vpow.pop %v1110
        %v1112 = vmul.f32 %v1095, 1.442695
        %v1113 = vpow.pop %v1112
        %v1114 = vmul.f32 %v1096, 1.442695
        %v1115 = vpow.pop %v1114
        %v1116 = vmul.f32 %v1097, 1.442695
        %v1117 = vpow.pop %v1116
        %v1118 = vmul.f32 %v1098, 1.442695
        %v1119 = vpow.pop %v1118
        %v1120 = vmul.f32 %v1099, 1.442695
        %v1121 = vpow.pop %v1120
        %v1122 = vmul.f32 %v1100, 1.442695
        %v1123 = vpow.pop %v1122
        %v1124 = vmul.f32 %v1101, 1.442695
        %v1125 = vpow.pop %v1124
        %v1126 = vmul.f32 %v1102, 1.442695
        %v1127 = vpow.pop %v1126
        %v1128 = vmul.f32 %v1103, 1.442695
        %v1129 = vpow.pop %v1128
        %v1130 = vmul.f32 %v1104, 1.442695
        %v1131 = vpow.pop %v1130
        %v1132 = vmul.f32 %v1105, 1.442695
        %v1133 = vpow.pop %v1132
        %v1134 = vmul.f32 %v1106, 1.442695
        %v1135 = vpow.pop %v1134
        %v1136 = vmul.f32 %v1107, 1.442695
        %v1137 = vpow.pop %v1136
        %v1138 = vmul.f32 %v1108, 1.442695
        %v1139 = vpow.pop %v1138
        %v1140 = vmul.f32 %v1109, 1.442695
        %v1141 = vpow.pop %v1140
        %1142 = vst.msk [vmem:[#allocation2] sm:$0xff] %vm679, %v1111
        %1143 = vst.msk [vmem:[#allocation2 + $0x8] sm:$0xff] %vm679, %v1113
        %1144 = vst.msk [vmem:[#allocation2 + $0x10] sm:$0xff] %vm679, %v1115
        %1145 = vst.msk [vmem:[#allocation2 + $0x18] sm:$0xff] %vm679, %v1117
        %1146 = vst.msk [vmem:[#allocation2 + $0x20] sm:$0xff] %vm679, %v1119
        %1147 = vst.msk [vmem:[#allocation2 + $0x28] sm:$0xff] %vm679, %v1121
        %1148 = vst.msk [vmem:[#allocation2 + $0x30] sm:$0xff] %vm679, %v1123
        %1149 = vst.msk [vmem:[#allocation2 + $0x38] sm:$0xff] %vm679, %v1125
        %1150 = vst.msk [vmem:[#allocation2 + $0x40] sm:$0xff] %vm679, %v1127
        %1151 = vst.msk [vmem:[#allocation2 + $0x48] sm:$0xff] %vm679, %v1129
        %1152 = vst.msk [vmem:[#allocation2 + $0x50] sm:$0xff] %vm679, %v1131
        %1153 = vst.msk [vmem:[#allocation2 + $0x58] sm:$0xff] %vm679, %v1133
        %1154 = vst.msk [vmem:[#allocation2 + $0x60] sm:$0xff] %vm679, %v1135
        %1155 = vst.msk [vmem:[#allocation2 + $0x68] sm:$0xff] %vm679, %v1137
        %1156 = vst.msk [vmem:[#allocation2 + $0x70] sm:$0xff] %vm679, %v1139
        %1157 = vst.msk [vmem:[#allocation2 + $0x78] sm:$0xff] %vm679, %v1141
        %v1158 = vlaneseq
        %v1159 = vshrl.u32 %v1158, 7
        %v1160 = vsub.s32 0, %v1159
        %v1161 = vrot.slane %v822, %v1160
        %1163 = vbcast.lane.b32.xlu0 %v1161, 256
        %v1164 = vpop.permute.xlu0 %1163
        %s1166 = sor.u32 256, 8
        %1167 = vbcast.lane.b32.xlu0 %v1161, %s1166
        %v1168 = vpop.permute.xlu0 %1167
        %v1169 = vlaneseq
        %v1170 = vshrl.u32 %v1169, 7
        %v1171 = vsub.s32 1, %v1170
        %v1172 = vrot.slane %v822, %v1171
        %1174 = vbcast.lane.b32.xlu0 %v1172, 256
        %v1175 = vpop.permute.xlu0 %1174
        %s1177 = sor.u32 256, 8
        %1178 = vbcast.lane.b32.xlu0 %v1172, %s1177
        %v1179 = vpop.permute.xlu0 %1178
        %v1180 = vlaneseq
        %v1181 = vshrl.u32 %v1180, 7
        %v1182 = vsub.s32 2, %v1181
        %v1183 = vrot.slane %v822, %v1182
        %1185 = vbcast.lane.b32.xlu0 %v1183, 256
        %v1186 = vpop.permute.xlu0 %1185
        %s1188 = sor.u32 256, 8
        %1189 = vbcast.lane.b32.xlu0 %v1183, %s1188
        %v1190 = vpop.permute.xlu0 %1189
        %v1191 = vlaneseq
        %v1192 = vshrl.u32 %v1191, 7
        %v1193 = vsub.s32 3, %v1192
        %v1194 = vrot.slane %v822, %v1193
        %1196 = vbcast.lane.b32.xlu0 %v1194, 256
        %v1197 = vpop.permute.xlu0 %1196
        %s1199 = sor.u32 256, 8
        %1200 = vbcast.lane.b32.xlu0 %v1194, %s1199
        %v1201 = vpop.permute.xlu0 %1200
        %v1202 = vlaneseq
        %v1203 = vshrl.u32 %v1202, 7
        %v1204 = vsub.s32 4, %v1203
        %v1205 = vrot.slane %v822, %v1204
        %1207 = vbcast.lane.b32.xlu0 %v1205, 256
        %v1208 = vpop.permute.xlu0 %1207
        %s1210 = sor.u32 256, 8
        %1211 = vbcast.lane.b32.xlu0 %v1205, %s1210
        %v1212 = vpop.permute.xlu0 %1211
        %v1213 = vlaneseq
        %v1214 = vshrl.u32 %v1213, 7
        %v1215 = vsub.s32 5, %v1214
        %v1216 = vrot.slane %v822, %v1215
        %1218 = vbcast.lane.b32.xlu0 %v1216, 256
        %v1219 = vpop.permute.xlu0 %1218
        %s1221 = sor.u32 256, 8
        %1222 = vbcast.lane.b32.xlu0 %v1216, %s1221
        %v1223 = vpop.permute.xlu0 %1222
        %v1224 = vlaneseq
        %v1225 = vshrl.u32 %v1224, 7
        %v1226 = vsub.s32 6, %v1225
        %v1227 = vrot.slane %v822, %v1226
        %1229 = vbcast.lane.b32.xlu0 %v1227, 256
        %v1230 = vpop.permute.xlu0 %1229
        %s1232 = sor.u32 256, 8
        %1233 = vbcast.lane.b32.xlu0 %v1227, %s1232
        %v1234 = vpop.permute.xlu0 %1233
        %v1235 = vlaneseq
        %v1236 = vshrl.u32 %v1235, 7
        %v1237 = vsub.s32 7, %v1236
        %v1238 = vrot.slane %v822, %v1237
        %1240 = vbcast.lane.b32.xlu0 %v1238, 256
        %v1241 = vpop.permute.xlu0 %1240
        %s1243 = sor.u32 256, 8
        %1244 = vbcast.lane.b32.xlu0 %v1238, %s1243
        %v1245 = vpop.permute.xlu0 %1244
        %v1247 = vcombine.high %v1000, %v1000
        %v1249 = vunpack.c.l.s4 1966171168
        %v1250 = vunpack.c.0.s8 %v1249
        %v1251 = vlaneseq
        %v1252 = vshrl.u32 %v1251, 7
        %v1253 = vsub.s32 %v1250, %v1252
        %v1254 = vrot.slane %v1000, %v1253
        %v1256 = vunpack.c.l.s4 1966171168
        %v1257 = vunpack.c.0.s8 %v1256
        %v1258 = vlaneseq
        %v1259 = vshrl.u32 %v1258, 7
        %v1260 = vsub.s32 %v1257, %v1259
        %v1261 = vrot.slane %v1247, %v1260
        %v1262 = vcombine.high %v1254, %v1254
        %v1263 = vcombine.high %v1261, %v1261
        %v1265 = vunpack.c.l.s4 1966171168
        %v1266 = vunpack.c.0.s8 %v1265
        %v1267 = vlaneseq
        %v1268 = vshrl.u32 %v1267, 7
        %v1269 = vsub.s32 %v1266, %v1268
        %v1270 = vrot.slane %v1254, %v1269
        %v1272 = vunpack.c.l.s4 1966171168
        %v1273 = vunpack.c.0.s8 %v1272
        %v1274 = vlaneseq
        %v1275 = vshrl.u32 %v1274, 7
        %v1276 = vsub.s32 %v1273, %v1275
        %v1277 = vrot.slane %v1261, %v1276
        %v1279 = vunpack.c.l.s4 1966171168
        %v1280 = vunpack.c.0.s8 %v1279
        %v1281 = vlaneseq
        %v1282 = vshrl.u32 %v1281, 7
        %v1283 = vsub.s32 %v1280, %v1282
        %v1284 = vrot.slane %v1262, %v1283
        %v1286 = vunpack.c.l.s4 1966171168
        %v1287 = vunpack.c.0.s8 %v1286
        %v1288 = vlaneseq
        %v1289 = vshrl.u32 %v1288, 7
        %v1290 = vsub.s32 %v1287, %v1289
        %v1291 = vrot.slane %v1263, %v1290
        %v1292 = vcombine.high %v1270, %v1270
        %v1293 = vcombine.high %v1277, %v1277
        %v1294 = vcombine.high %v1284, %v1284
        %v1295 = vcombine.high %v1291, %v1291
        %v1296 = vlaneseq
        %v1297 = vshrl.u32 %v1296, 7
        %v1298 = vsub.s32 0, %v1297
        %v1299 = vrot.slane %v1270, %v1298
        %v1300 = vlaneseq
        %v1301 = vshrl.u32 %v1300, 7
        %v1302 = vsub.s32 0, %v1301
        %v1303 = vrot.slane %v1284, %v1302
        %v1304 = vlaneseq
        %v1305 = vshrl.u32 %v1304, 7
        %v1306 = vsub.s32 0, %v1305
        %v1307 = vrot.slane %v1292, %v1306
        %v1308 = vlaneseq
        %v1309 = vshrl.u32 %v1308, 7
        %v1310 = vsub.s32 0, %v1309
        %v1311 = vrot.slane %v1294, %v1310
        %v1312 = vlaneseq
        %v1313 = vshrl.u32 %v1312, 7
        %v1314 = vsub.s32 0, %v1313
        %v1315 = vrot.slane %v1277, %v1314
        %v1316 = vlaneseq
        %v1317 = vshrl.u32 %v1316, 7
        %v1318 = vsub.s32 0, %v1317
        %v1319 = vrot.slane %v1291, %v1318
        %v1320 = vlaneseq
        %v1321 = vshrl.u32 %v1320, 7
        %v1322 = vsub.s32 0, %v1321
        %v1323 = vrot.slane %v1293, %v1322
        %v1324 = vlaneseq
        %v1325 = vshrl.u32 %v1324, 7
        %v1326 = vsub.s32 0, %v1325
        %v1327 = vrot.slane %v1295, %v1326
        %v1336 = vmul.f32 %v1164, %v1299
        %v1337 = vmul.f32 %v1168, %v1299
        %v1338 = vmul.f32 %v1175, %v1303
        %v1339 = vmul.f32 %v1179, %v1303
        %v1340 = vmul.f32 %v1186, %v1307
        %v1341 = vmul.f32 %v1190, %v1307
        %v1342 = vmul.f32 %v1197, %v1311
        %v1343 = vmul.f32 %v1201, %v1311
        %v1344 = vmul.f32 %v1208, %v1315
        %v1345 = vmul.f32 %v1212, %v1315
        %v1346 = vmul.f32 %v1219, %v1319
        %v1347 = vmul.f32 %v1223, %v1319
        %v1348 = vmul.f32 %v1230, %v1323
        %v1349 = vmul.f32 %v1234, %v1323
        %v1350 = vmul.f32 %v1241, %v1327
        %v1351 = vmul.f32 %v1245, %v1327
        %1352 = vst.msk [vmem:[#allocation3] sm:$0xff] %vm679, %v1336
        %1353 = vst.msk [vmem:[#allocation3 + $0x8] sm:$0xff] %vm679, %v1337
        %1354 = vst.msk [vmem:[#allocation3 + $0x10] sm:$0xff] %vm679, %v1338
        %1355 = vst.msk [vmem:[#allocation3 + $0x18] sm:$0xff] %vm679, %v1339
        %1356 = vst.msk [vmem:[#allocation3 + $0x20] sm:$0xff] %vm679, %v1340
        %1357 = vst.msk [vmem:[#allocation3 + $0x28] sm:$0xff] %vm679, %v1341
        %1358 = vst.msk [vmem:[#allocation3 + $0x30] sm:$0xff] %vm679, %v1342
        %1359 = vst.msk [vmem:[#allocation3 + $0x38] sm:$0xff] %vm679, %v1343
        %1360 = vst.msk [vmem:[#allocation3 + $0x40] sm:$0xff] %vm679, %v1344
        %1361 = vst.msk [vmem:[#allocation3 + $0x48] sm:$0xff] %vm679, %v1345
        %1362 = vst.msk [vmem:[#allocation3 + $0x50] sm:$0xff] %vm679, %v1346
        %1363 = vst.msk [vmem:[#allocation3 + $0x58] sm:$0xff] %vm679, %v1347
        %1364 = vst.msk [vmem:[#allocation3 + $0x60] sm:$0xff] %vm679, %v1348
        %1365 = vst.msk [vmem:[#allocation3 + $0x68] sm:$0xff] %vm679, %v1349
        %1366 = vst.msk [vmem:[#allocation3 + $0x70] sm:$0xff] %vm679, %v1350
        %1367 = vst.msk [vmem:[#allocation3 + $0x78] sm:$0xff] %vm679, %v1351
        %v1368 = vld [vmem:[#allocation2] sm:$0xff]
        %v1369 = vld [vmem:[#allocation2 + $0x8] sm:$0xff]
        %v1370 = vmul.f32 %v1368, 0.0
        %v1371 = vmul.f32 %v1369, 0.0
        %v1372 = vld [vmem:[#allocation3] sm:$0xff]
        %v1373 = vld [vmem:[#allocation3 + $0x8] sm:$0xff]
        %v1374 = vadd.f32 %v1370, %v1372
        %v1375 = vadd.f32 %v1371, %v1373
        %v1376 = vld [vmem:[#allocation4] sm:$0x1]
        %v1377 = vlaneseq
        %v1378 = vshrl.u32 %v1377, 7
        %v1379 = vsub.s32 0, %v1378
        %v1380 = vrot.slane %v1376, %v1379
        %1382 = vbcast.lane.b32.xlu0 %v1380, 256
        %v1383 = vpop.permute.xlu0 %1382
        %s1385 = sor.u32 256, 8
        %1386 = vbcast.lane.b32.xlu0 %v1380, %s1385
        %v1387 = vpop.permute.xlu0 %1386
        %v1388 = vmul.f32 %v1383, %v1374
        %v1389 = vmul.f32 %v1387, %v1375
        %v1390 = vsel %vm679, %v1388, 0.0
        %v1391 = vsel %vm679, %v1389, 0.0
        %v1392 = vadd.f32 %v1390, %v1391
        %v1393 = vrot.slane %v1392, 4
        %v1394 = vadd.f32 %v1392, %v1393
        %v1395 = vrot.slane %v1394, 2
        %v1396 = vadd.f32 %v1394, %v1395
        %v1397 = vrot.slane %v1396, 1
        %v1398 = vadd.f32 %v1396, %v1397
        %vm1399 = vcmask 122880
        %1400 = vst.msk [vmem:[#allocation5] sm:$0x1] %vm1399, %v1398
        %s1401 = scalar_lea.vmem [#allocation2], 16
        %v1402 = vld [vmem:[%s1401] sm:$0xff]
        %v1403 = vld [vmem:[%s1401 + $0x8] sm:$0xff]
        %v1404 = vmul.f32 %v1402, %v1374
        %v1405 = vmul.f32 %v1403, %v1375
        %s1406 = scalar_lea.vmem [#allocation3], 16
        %v1407 = vld [vmem:[%s1406] sm:$0xff]
        %v1408 = vld [vmem:[%s1406 + $0x8] sm:$0xff]
        %v1409 = vadd.f32 %v1404, %v1407
        %v1410 = vadd.f32 %v1405, %v1408
        %v1411 = vld [vmem:[#allocation4 + $0x1] sm:$0x1]
        %v1412 = vlaneseq
        %v1413 = vshrl.u32 %v1412, 7
        %v1414 = vsub.s32 0, %v1413
        %v1415 = vrot.slane %v1411, %v1414
        %1417 = vbcast.lane.b32.xlu0 %v1415, 256
        %v1418 = vpop.permute.xlu0 %1417
        %s1420 = sor.u32 256, 8
        %1421 = vbcast.lane.b32.xlu0 %v1415, %s1420
        %v1422 = vpop.permute.xlu0 %1421
        %v1423 = vmul.f32 %v1418, %v1409
        %v1424 = vmul.f32 %v1422, %v1410
        %v1425 = vsel %vm679, %v1423, 0.0
        %v1426 = vsel %vm679, %v1424, 0.0
        %v1427 = vadd.f32 %v1425, %v1426
        %v1428 = vrot.slane %v1427, 4
        %v1429 = vadd.f32 %v1427, %v1428
        %v1430 = vrot.slane %v1429, 2
        %v1431 = vadd.f32 %v1429, %v1430
        %v1432 = vrot.slane %v1431, 1
        %v1433 = vadd.f32 %v1431, %v1432
        %1434 = vst.msk [vmem:[#allocation5 + $0x1] sm:$0x1] %vm1399, %v1433
        %s1435 = scalar_lea.vmem [#allocation2], 32
        %v1436 = vld [vmem:[%s1435] sm:$0xff]
        %v1437 = vld [vmem:[%s1435 + $0x8] sm:$0xff]
        %v1438 = vmul.f32 %v1436, %v1409
        %v1439 = vmul.f32 %v1437, %v1410
        %s1440 = scalar_lea.vmem [#allocation3], 32
        %v1441 = vld [vmem:[%s1440] sm:$0xff]
        %v1442 = vld [vmem:[%s1440 + $0x8] sm:$0xff]
        %v1443 = vadd.f32 %v1438, %v1441
        %v1444 = vadd.f32 %v1439, %v1442
        %v1445 = vld [vmem:[#allocation4 + $0x2] sm:$0x1]
        %v1446 = vlaneseq
        %v1447 = vshrl.u32 %v1446, 7
        %v1448 = vsub.s32 0, %v1447
        %v1449 = vrot.slane %v1445, %v1448
        %1451 = vbcast.lane.b32.xlu0 %v1449, 256
        %v1452 = vpop.permute.xlu0 %1451
        %s1454 = sor.u32 256, 8
        %1455 = vbcast.lane.b32.xlu0 %v1449, %s1454
        %v1456 = vpop.permute.xlu0 %1455
        %v1457 = vmul.f32 %v1452, %v1443
        %v1458 = vmul.f32 %v1456, %v1444
        %v1459 = vsel %vm679, %v1457, 0.0
        %v1460 = vsel %vm679, %v1458, 0.0
        %v1461 = vadd.f32 %v1459, %v1460
        %v1462 = vrot.slane %v1461, 4
        %v1463 = vadd.f32 %v1461, %v1462
        %v1464 = vrot.slane %v1463, 2
        %v1465 = vadd.f32 %v1463, %v1464
        %v1466 = vrot.slane %v1465, 1
        %v1467 = vadd.f32 %v1465, %v1466
        %1468 = vst.msk [vmem:[#allocation5 + $0x2] sm:$0x1] %vm1399, %v1467
        %s1469 = scalar_lea.vmem [#allocation2], 48
        %v1470 = vld [vmem:[%s1469] sm:$0xff]
        %v1471 = vld [vmem:[%s1469 + $0x8] sm:$0xff]
        %v1472 = vmul.f32 %v1470, %v1443
        %v1473 = vmul.f32 %v1471, %v1444
        %s1474 = scalar_lea.vmem [#allocation3], 48
        %v1475 = vld [vmem:[%s1474] sm:$0xff]
        %v1476 = vld [vmem:[%s1474 + $0x8] sm:$0xff]
        %v1477 = vadd.f32 %v1472, %v1475
        %v1478 = vadd.f32 %v1473, %v1476
        %v1479 = vld [vmem:[#allocation4 + $0x3] sm:$0x1]
        %v1480 = vlaneseq
        %v1481 = vshrl.u32 %v1480, 7
        %v1482 = vsub.s32 0, %v1481
        %v1483 = vrot.slane %v1479, %v1482
        %1485 = vbcast.lane.b32.xlu0 %v1483, 256
        %v1486 = vpop.permute.xlu0 %1485
        %s1488 = sor.u32 256, 8
        %1489 = vbcast.lane.b32.xlu0 %v1483, %s1488
        %v1490 = vpop.permute.xlu0 %1489
        %v1491 = vmul.f32 %v1486, %v1477
        %v1492 = vmul.f32 %v1490, %v1478
        %v1493 = vsel %vm679, %v1491, 0.0
        %v1494 = vsel %vm679, %v1492, 0.0
        %v1495 = vadd.f32 %v1493, %v1494
        %v1496 = vrot.slane %v1495, 4
        %v1497 = vadd.f32 %v1495, %v1496
        %v1498 = vrot.slane %v1497, 2
        %v1499 = vadd.f32 %v1497, %v1498
        %v1500 = vrot.slane %v1499, 1
        %v1501 = vadd.f32 %v1499, %v1500
        %1502 = vst.msk [vmem:[#allocation5 + $0x3] sm:$0x1] %vm1399, %v1501
        %s1503 = scalar_lea.vmem [#allocation2], 64
        %v1504 = vld [vmem:[%s1503] sm:$0xff]
        %v1505 = vld [vmem:[%s1503 + $0x8] sm:$0xff]
        %v1506 = vmul.f32 %v1504, %v1477
        %v1507 = vmul.f32 %v1505, %v1478
        %s1508 = scalar_lea.vmem [#allocation3], 64
        %v1509 = vld [vmem:[%s1508] sm:$0xff]
        %v1510 = vld [vmem:[%s1508 + $0x8] sm:$0xff]
        %v1511 = vadd.f32 %v1506, %v1509
        %v1512 = vadd.f32 %v1507, %v1510
        %v1513 = vld [vmem:[#allocation4 + $0x4] sm:$0x1]
        %v1514 = vlaneseq
        %v1515 = vshrl.u32 %v1514, 7
        %v1516 = vsub.s32 0, %v1515
        %v1517 = vrot.slane %v1513, %v1516
        %1519 = vbcast.lane.b32.xlu0 %v1517, 256
        %v1520 = vpop.permute.xlu0 %1519
        %s1522 = sor.u32 256, 8
        %1523 = vbcast.lane.b32.xlu0 %v1517, %s1522
        %v1524 = vpop.permute.xlu0 %1523
        %v1525 = vmul.f32 %v1520, %v1511
        %v1526 = vmul.f32 %v1524, %v1512
        %v1527 = vsel %vm679, %v1525, 0.0
        %v1528 = vsel %vm679, %v1526, 0.0
        %v1529 = vadd.f32 %v1527, %v1528
        %v1530 = vrot.slane %v1529, 4
        %v1531 = vadd.f32 %v1529, %v1530
        %v1532 = vrot.slane %v1531, 2
        %v1533 = vadd.f32 %v1531, %v1532
        %v1534 = vrot.slane %v1533, 1
        %v1535 = vadd.f32 %v1533, %v1534
        %1536 = vst.msk [vmem:[#allocation5 + $0x4] sm:$0x1] %vm1399, %v1535
        %s1537 = scalar_lea.vmem [#allocation2], 80
        %v1538 = vld [vmem:[%s1537] sm:$0xff]
        %v1539 = vld [vmem:[%s1537 + $0x8] sm:$0xff]
        %v1540 = vmul.f32 %v1538, %v1511
        %v1541 = vmul.f32 %v1539, %v1512
        %s1542 = scalar_lea.vmem [#allocation3], 80
        %v1543 = vld [vmem:[%s1542] sm:$0xff]
        %v1544 = vld [vmem:[%s1542 + $0x8] sm:$0xff]
        %v1545 = vadd.f32 %v1540, %v1543
        %v1546 = vadd.f32 %v1541, %v1544
        %v1547 = vld [vmem:[#allocation4 + $0x5] sm:$0x1]
        %v1548 = vlaneseq
        %v1549 = vshrl.u32 %v1548, 7
        %v1550 = vsub.s32 0, %v1549
        %v1551 = vrot.slane %v1547, %v1550
        %1553 = vbcast.lane.b32.xlu0 %v1551, 256
        %v1554 = vpop.permute.xlu0 %1553
        %s1556 = sor.u32 256, 8
        %1557 = vbcast.lane.b32.xlu0 %v1551, %s1556
        %v1558 = vpop.permute.xlu0 %1557
        %v1559 = vmul.f32 %v1554, %v1545
        %v1560 = vmul.f32 %v1558, %v1546
        %v1561 = vsel %vm679, %v1559, 0.0
        %v1562 = vsel %vm679, %v1560, 0.0
        %v1563 = vadd.f32 %v1561, %v1562
        %v1564 = vrot.slane %v1563, 4
        %v1565 = vadd.f32 %v1563, %v1564
        %v1566 = vrot.slane %v1565, 2
        %v1567 = vadd.f32 %v1565, %v1566
        %v1568 = vrot.slane %v1567, 1
        %v1569 = vadd.f32 %v1567, %v1568
        %1570 = vst.msk [vmem:[#allocation5 + $0x5] sm:$0x1] %vm1399, %v1569
        %s1571 = scalar_lea.vmem [#allocation2], 96
        %v1572 = vld [vmem:[%s1571] sm:$0xff]
        %v1573 = vld [vmem:[%s1571 + $0x8] sm:$0xff]
        %v1574 = vmul.f32 %v1572, %v1545
        %v1575 = vmul.f32 %v1573, %v1546
        %s1576 = scalar_lea.vmem [#allocation3], 96
        %v1577 = vld [vmem:[%s1576] sm:$0xff]
        %v1578 = vld [vmem:[%s1576 + $0x8] sm:$0xff]
        %v1579 = vadd.f32 %v1574, %v1577
        %v1580 = vadd.f32 %v1575, %v1578
        %v1581 = vld [vmem:[#allocation4 + $0x6] sm:$0x1]
        %v1582 = vlaneseq
        %v1583 = vshrl.u32 %v1582, 7
        %v1584 = vsub.s32 0, %v1583
        %v1585 = vrot.slane %v1581, %v1584
        %1587 = vbcast.lane.b32.xlu0 %v1585, 256
        %v1588 = vpop.permute.xlu0 %1587
        %s1590 = sor.u32 256, 8
        %1591 = vbcast.lane.b32.xlu0 %v1585, %s1590
        %v1592 = vpop.permute.xlu0 %1591
        %v1593 = vmul.f32 %v1588, %v1579
        %v1594 = vmul.f32 %v1592, %v1580
        %v1595 = vsel %vm679, %v1593, 0.0
        %v1596 = vsel %vm679, %v1594, 0.0
        %v1597 = vadd.f32 %v1595, %v1596
        %v1598 = vrot.slane %v1597, 4
        %v1599 = vadd.f32 %v1597, %v1598
        %v1600 = vrot.slane %v1599, 2
        %v1601 = vadd.f32 %v1599, %v1600
        %v1602 = vrot.slane %v1601, 1
        %v1603 = vadd.f32 %v1601, %v1602
        %1604 = vst.msk [vmem:[#allocation5 + $0x6] sm:$0x1] %vm1399, %v1603
        %s1605 = scalar_lea.vmem [#allocation2], 112
        %v1606 = vld [vmem:[%s1605] sm:$0xff]
        %v1607 = vld [vmem:[%s1605 + $0x8] sm:$0xff]
        %v1608 = vmul.f32 %v1606, %v1579
        %v1609 = vmul.f32 %v1607, %v1580
        %s1610 = scalar_lea.vmem [#allocation3], 112
        %v1611 = vld [vmem:[%s1610] sm:$0xff]
        %v1612 = vld [vmem:[%s1610 + $0x8] sm:$0xff]
        %v1613 = vadd.f32 %v1608, %v1611
        %v1614 = vadd.f32 %v1609, %v1612
        %v1615 = vld [vmem:[#allocation4 + $0x7] sm:$0x1]
        %v1616 = vlaneseq
        %v1617 = vshrl.u32 %v1616, 7
        %v1618 = vsub.s32 0, %v1617
        %v1619 = vrot.slane %v1615, %v1618
        %1621 = vbcast.lane.b32.xlu0 %v1619, 256
        %v1622 = vpop.permute.xlu0 %1621
        %s1624 = sor.u32 256, 8
        %1625 = vbcast.lane.b32.xlu0 %v1619, %s1624
        %v1626 = vpop.permute.xlu0 %1625
        %v1627 = vmul.f32 %v1622, %v1613
        %v1628 = vmul.f32 %v1626, %v1614
        %v1629 = vsel %vm679, %v1627, 0.0
        %v1630 = vsel %vm679, %v1628, 0.0
        %v1631 = vadd.f32 %v1629, %v1630
        %v1632 = vrot.slane %v1631, 4
        %v1633 = vadd.f32 %v1631, %v1632
        %v1634 = vrot.slane %v1633, 2
        %v1635 = vadd.f32 %v1633, %v1634
        %v1636 = vrot.slane %v1635, 1
        %v1637 = vadd.f32 %v1635, %v1636
        %1638 = vst.msk [vmem:[#allocation5 + $0x7] sm:$0x1] %vm1399, %v1637
        %v1639 = vld [vmem:[#allocation5] sm:$0xff]
        %v1640 = vld [vmem:[%s11] sm:$0x1]
        %v1642 = vlaneseq
        %v1643 = vshrl.u32 %v1642, 7
        %v1644 = vsub.s32 0, %v1643
        %v1645 = vrot.slane %v1640, %v1644
        %v1647 = vmul.f32 %v676, %v1645
        %v1648 = vadd.f32 %v1639, %v1647
        %v1649 = vxor.u32 %v618, 2147483648
        %v1650 = vmul.f32 %v1649, 1.442695
        %v1651 = vpow.pop %v1650
        %v1652 = vadd.f32 %v1651, 1.0
        %v1653 = vrcp.pop %v1652
        %v1654 = vmul.f32 1.0, %v1653
        %v1655 = vmul.f32 %v618, %v1654
        %v1656 = vmul.f32 %v1648, %v1655
        %v1657 = vld [vmem:[%s12] sm:$0xff]
        %v1658 = vld [vmem:[%s12 + $0x8] sm:$0xff]
        %v1660 = vsel %vm679, %v1656, 0
        %1662 = vmatprep.subr.mxu0 0.0
        %1663 = vmatpush1.msra.mxu0 %v1657
        %1664 = vmatprep.subr.mxu0 0.0
        %1665 = vmatpush1.msra.mxu0 %v1658
        %1666 = vmatprep.subr.mxu0 0.0
        %1667 = vmatpush1.msra.mxu0 0.0
        %1668 = vmatprep.subr.mxu0 0.0
        %1669 = vmatpush1.msra.mxu0 0.0
        %1670 = vmatprep.subr.mxu0 0.0
        %1671 = vmatpush1.msra.mxu0 0.0
        %1672 = vmatprep.subr.mxu0 0.0
        %1673 = vmatpush1.msra.mxu0 0.0
        %1674 = vmatprep.subr.mxu0 0.0
        %1675 = vmatpush1.msra.mxu0 0.0
        %1676 = vmatprep.subr.mxu0 0.0
        %1677 = vmatpush1.msra.mxu0 0.0
        %1678 = vmatprep.subr.mxu0 0.0
        %1679 = vmatpush1.msra.mxu0 0.0
        %1680 = vmatprep.subr.mxu0 0.0
        %1681 = vmatpush1.msra.mxu0 0.0
        %1682 = vmatprep.subr.mxu0 0.0
        %1683 = vmatpush1.msra.mxu0 0.0
        %1684 = vmatprep.subr.mxu0 0.0
        %1685 = vmatpush1.msra.mxu0 0.0
        %1686 = vmatprep.subr.mxu0 0.0
        %1687 = vmatpush1.msra.mxu0 0.0
        %1688 = vmatprep.subr.mxu0 0.0
        %1689 = vmatpush1.msra.mxu0 0.0
        %1690 = vmatprep.subr.mxu0 0.0
        %1691 = vmatpush1.msra.mxu0 0.0
        %1692 = vmatprep.subr.mxu0 0.0
        %1693 = vmatpush1.msra.mxu0 0.0
        %1694 = vmatprep.subr.mxu0 0.0
        %1695 = vmatpush1.msra.mxu0 0.0
        %1696 = vmatprep.subr.mxu0 0.0
        %1697 = vmatpush1.msra.mxu0 0.0
        %1698 = vmatprep.subr.mxu0 0.0
        %1699 = vmatpush1.msra.mxu0 0.0
        %1700 = vmatprep.subr.mxu0 0.0
        %1701 = vmatpush1.msra.mxu0 0.0
        %1702 = vmatprep.subr.mxu0 0.0
        %1703 = vmatpush1.msra.mxu0 0.0
        %1704 = vmatprep.subr.mxu0 0.0
        %1705 = vmatpush1.msra.mxu0 0.0
        %1706 = vmatprep.subr.mxu0 0.0
        %1707 = vmatpush1.msra.mxu0 0.0
        %1708 = vmatprep.subr.mxu0 0.0
        %1709 = vmatpush1.msra.mxu0 0.0
        %1710 = vmatprep.subr.mxu0 0.0
        %1711 = vmatpush1.msra.mxu0 0.0
        %1712 = vmatprep.subr.mxu0 0.0
        %1713 = vmatpush1.msra.mxu0 0.0
        %1714 = vmatprep.subr.mxu0 0.0
        %1715 = vmatpush1.msra.mxu0 0.0
        %1716 = vmatprep.subr.mxu0 0.0
        %1717 = vmatpush1.msra.mxu0 0.0
        %1718 = vmatprep.subr.mxu0 0.0
        %1719 = vmatpush1.msra.mxu0 0.0
        %1720 = vmatprep.subr.mxu0 0.0
        %1721 = vmatpush1.msra.mxu0 0.0
        %1722 = vmatprep.subr.mxu0 0.0
        %1723 = vmatpush1.msra.mxu0 0.0
        %1724 = vmatprep.subr.mxu0 0.0
        %1725 = vmatpush1.msra.mxu0 0.0
        %1726 = vmatprep.mubr.f32.mxu0 0.0
        %1727 = vmatmul.mubr.f32.gmra.mrb[0].mxu0 %v1660
        %v1728 = vpop.f32.mrb[0].mxu0
        %v1729 = vadd.f32 0.0, %v1728
        %v1730 = vpop.f32.mrb[0].mxu0
        %1731 = vdwg.mxu0
        %1732 = vst.msk [vmem:[%s469] sm:$0xff] %vm476, %v1729
        %s1733 = sand.u32 %s315, 1
        %s1734 = scalar_lea.sflag [#allocation8], %s1733
        %s1735 = sand.u32 %s315, 1
        %s1736 = smul.addr %s1735, 8
        %s1737 = scalar_lea.vmem [#allocation12], %s1736
        // Predicated region
        $region85: #{tpu_custom_call.1} parent=71 // pred_check
          %p1738 = pneg %p325
        $region86: #{tpu_custom_call.1} parent=71 // pred_check_branch
          %1740 = sbr.rel (%p1738) target = $region88
        $region87: #{tpu_custom_call.1} parent=71 // pred_region
          %s1742 = ssub.s32 128, 128
          %1743 = vsyncadd %s1734, %s1742
          %s1744 = smul.addr %s29, 128
          %s1745 = scalar_lea.hbm %s13, %s1744
          %s1747 = sshll.u32 %s1737, 4
          %s1748 = int_to_ptr.vmem [resolvable:$true] %s1747
          %1750 = dma.vmem_to_hbm [thread:$0]  %s1748, 128, %s1745, %s1734
        $region88: #{tpu_custom_call.1} parent=71 // pred_fallthru
          _
      $region72: #{tpu_custom_call.1} parent=5 // pred_fallthru
        _
      %p1751 = scmp.le.s32.totalorder 2, %s24
      // Predicated region
      $region89: #{tpu_custom_call.1} parent=5 // pred_check
        %p1752 = pneg %p1751
      $region90: #{tpu_custom_call.1} parent=5 // pred_check_branch
        %1754 = sbr.rel (%p1752) target = $region92
      $region91: #{tpu_custom_call.1} parent=5 // pred_region
        %s1755 = ssub.s32 %s24, 2
        // Predicated region
        $region93: #{tpu_custom_call.1} parent=91 // pred_check
          %p1756 = pneg %p331
        $region94: #{tpu_custom_call.1} parent=91 // pred_check_branch
          %1758 = sbr.rel (%p1756) target = $region96
        $region95: #{tpu_custom_call.1} parent=91 // pred_region
          %s1759 = sand.u32 %s316, 1
          %s1760 = scalar_lea.sflag [#allocation8], %s1759
          %s1761 = sand.u32 %s316, 1
          %s1762 = smul.addr %s1761, 8
          %s1763 = scalar_lea.vmem [#allocation12], %s1762
          %1764 = dma.done %s1760, 128
        $region96: #{tpu_custom_call.1} parent=91 // pred_fallthru
          _
      $region92: #{tpu_custom_call.1} parent=5 // pred_fallthru
        _
    $region6: #{tpu_custom_call.1} parent=1 // loop_footer
      %s28 = sadd.s32 1, %s24
    $region7: #{tpu_custom_call.1} parent=1 // loop_footer_branch
      %23 = sbr.rel target = $region3
    $region8: #{tpu_custom_call.1} parent=1 // loop_exit
      _
    %1765 = vsyncpa [#allocation7], 1
    %s1766 = scalar_lea.sflag [#allocation7], 1
    %1767 = vsyncpa %s1766, 1
    %1768 = vsyncpa [#allocation10], 1
    %1769 = vsyncpa [#allocation8], 1
    %s1770 = scalar_lea.sflag [#allocation8], 1
    %1771 = vsyncpa %s1770, 1

</llo_original>
